<compile_context>
chip_gen: v5e
topology: v5e:2x2
jax: 0.10.0
libtpu: 0.0.40
codegen_flags: <defaults>
</compile_context>

<pallas_src>
import functools

import jax
import jax.numpy as jnp
from jax.experimental import pallas as pl
from jax.experimental.pallas import tpu as pltpu

_INV_SQRT2 = 0.7071067811865476


def _mlp_kernel(x_ref, w1_ref, b1_ref, w2_ref, b2_ref, o_ref, *, approximate_gelu):
    # x_ref:  (tm, C_in)   input row tile (stored dtype)
    # w1_ref: (C_in, H)    fc1 weight, (in, out) layout, stored dtype
    # b1_ref: (1, H)       fc1 bias
    # w2_ref: (H, C_out)   fc2 weight
    # b2_ref: (1, C_out)   fc2 bias
    # o_ref:  (tm, C_out)  output tile
    # fc1: MXU runs in the stored dtype (bf16 fast path if bf16); f32 accumulate.
    h = jnp.dot(x_ref[...], w1_ref[...], preferred_element_type=jnp.float32)
    h = h + b1_ref[...].astype(jnp.float32)

    if approximate_gelu:
        # tanh approximation -> EUP slot (nearly free when VALU-bound).
        h = jax.nn.gelu(h, approximate=True)
    else:
        # exact erf GELU (PyTorch nn.GELU default), f32 math.
        h = 0.5 * h * (1.0 + jax.lax.erf(h * _INV_SQRT2))

    # dropout(p=0.0) is the identity -> no-op.

    # fc2: cast the activation back to the weight dtype so the MXU stays on the
    # fast path; accumulate f32, add bias, cast to the output dtype.
    h = h.astype(w2_ref.dtype)
    y = jnp.dot(h, w2_ref[...], preferred_element_type=jnp.float32)
    y = y + b2_ref[...].astype(jnp.float32)
    o_ref[...] = y.astype(o_ref.dtype)


def _round_up(x, m):
    return (x + m - 1) // m * m


@functools.partial(
    jax.jit,
    static_argnames=("tm", "single_buffer_weights", "approximate_gelu"))
def mlp_pallas(x, w1, b1, w2, b2, *, tm=256, single_buffer_weights=True,
               approximate_gelu=False):
    """x: (B, N, C_in) -> (B, N, C_out). Weights stored as (in, out)."""
    B, N, C_in = x.shape
    assert w1.shape[0] == C_in
    H = w1.shape[1]
    assert w2.shape[0] == H and b1.shape == (H,)
    C_out = w2.shape[1]
    assert b2.shape == (C_out,)
    M = B * N

    # Lane-dense padding (exact: zero K columns/rows contribute 0, GELU(0)=0).
    C_in_p = _round_up(C_in, 128)
    H_p = _round_up(H, 128)
    C_out_p = _round_up(C_out, 128)

    # Row tile: as large as possible, capped / 8-aligned for small problems.
    tm_eff = min(tm, _round_up(M, 8))
    M_p = _round_up(M, tm_eff)

    x2d = jnp.pad(x.reshape(M, C_in), ((0, M_p - M), (0, C_in_p - C_in)))
    w1_p = jnp.pad(w1, ((0, C_in_p - C_in), (0, H_p - H)))
    b1_p = jnp.pad(b1, (0, H_p - H)).reshape(1, H_p)
    w2_p = jnp.pad(w2, ((0, H_p - H), (0, C_out_p - C_out)))
    b2_p = jnp.pad(b2, (0, C_out_p - C_out)).reshape(1, C_out_p)

    # Weights/biases have a constant index_map -> no need to double-buffer.
    wmode = pl.Buffered(1) if single_buffer_weights else None
    wbuf = 1 if single_buffer_weights else 2

    # Scoped-VMEM budget from the actual working set, capped at 64 MiB so the
    # same request is valid on v7x (64 MiB VMEM) as well as v5e/v6e (128 MiB).
    xb, wb = x.dtype.itemsize, w1.dtype.itemsize
    vmem_est = (
        2 * tm_eff * C_in_p * xb                                   # in tile x2
        + 2 * tm_eff * C_out_p * xb                                # out tile x2
        + wbuf * (C_in_p * H_p + H_p * C_out_p + H_p + C_out_p) * wb
        + tm_eff * (H_p + C_out_p) * 4)                            # f32 temps
    vmem_limit = int(min(max(vmem_est * 5 // 4 + (4 << 20), 32 << 20), 64 << 20))
    # TODO(synk): for ViT-L-sized f32 weights on v7x, add a grid axis over
    # C_out / H instead of keeping both weights whole-resident in VMEM.

    kernel = functools.partial(_mlp_kernel, approximate_gelu=approximate_gelu)

    out2d = pl.pallas_call(
        kernel,
        out_shape=jax.ShapeDtypeStruct((M_p, C_out_p), x.dtype),
        grid_spec=pltpu.PrefetchScalarGridSpec(
            num_scalar_prefetch=0,
            grid=(M_p // tm_eff,),
            in_specs=[
                pl.BlockSpec((tm_eff, C_in_p), lambda i: (i, 0)),                  # x rows
                pl.BlockSpec((C_in_p, H_p), lambda i: (0, 0), pipeline_mode=wmode),  # w1
                pl.BlockSpec((1, H_p), lambda i: (0, 0), pipeline_mode=wmode),       # b1
                pl.BlockSpec((H_p, C_out_p), lambda i: (0, 0), pipeline_mode=wmode),  # w2
                pl.BlockSpec((1, C_out_p), lambda i: (0, 0), pipeline_mode=wmode),    # b2
            ],
            out_specs=pl.BlockSpec((tm_eff, C_out_p), lambda i: (i, 0)),
        ),
        compiler_params=pltpu.CompilerParams(
            dimension_semantics=("parallel",),  # shards row tiles across v7x's 2 TCs
            vmem_limit_bytes=vmem_limit),
    )(x2d, w1_p, b1_p, w2_p, b2_p)

    return out2d[:M, :C_out].reshape(B, N, C_out)


def _reference(x, w1, b1, w2, b2):
    h = jnp.einsum("bnc,ch->bnh", x, w1) + b1
    h = jax.nn.gelu(h, approximate=False)
    y = jnp.einsum("bnh,ho->bno", h, w2) + b2
    return y


if __name__ == "__main__":
    key = jax.random.PRNGKey(0)
    kx, k1, k2, k3, k4 = jax.random.split(key, 5)

    # Small, lane-aligned ViT-like shapes.
    B, N, C_in, H, C_out = 2, 16, 128, 256, 128
    x = jax.random.normal(kx, (B, N, C_in), dtype=jnp.float32)
    w1 = jax.random.normal(k1, (C_in, H), dtype=jnp.float32) * 0.05
    b1 = jax.random.normal(k2, (H,), dtype=jnp.float32) * 0.05
    w2 = jax.random.normal(k3, (H, C_out), dtype=jnp.float32) * 0.05
    b2 = jax.random.normal(k4, (C_out,), dtype=jnp.float32) * 0.05

    single_buffer = True
    try:
        out = mlp_pallas(x, w1, b1, w2, b2, single_buffer_weights=True)
        jax.block_until_ready(out)
    except Exception:
        # Fallback if this JAX build rejects single-buffer pipeline_mode.
        single_buffer = False
        out = mlp_pallas(x, w1, b1, w2, b2, single_buffer_weights=False)
        jax.block_until_ready(out)

    ref = _reference(x, w1, b1, w2, b2)
    assert out.shape == (B, N, C_out)
    err = float(jnp.max(jnp.abs(out - ref)))
    assert jnp.allclose(out, ref, atol=2e-4, rtol=2e-4), err

    # Non-128-aligned / non-tile-aligned shapes exercise the padding path.
    B2, N2, C2, H2, O2 = 2, 7, 32, 48, 40
    x2 = jax.random.normal(kx, (B2, N2, C2), dtype=jnp.float32)
    w1b = jax.random.normal(k1, (C2, H2), dtype=jnp.float32) * 0.05
    b1b = jax.random.normal(k2, (H2,), dtype=jnp.float32) * 0.05
    w2b = jax.random.normal(k3, (H2, O2), dtype=jnp.float32) * 0.05
    b2b = jax.random.normal(k4, (O2,), dtype=jnp.float32) * 0.05
    out2 = mlp_pallas(x2, w1b, b1b, w2b, b2b,
                      single_buffer_weights=single_buffer)
    jax.block_until_ready(out2)
    ref2 = _reference(x2, w1b, b1b, w2b, b2b)
    assert out2.shape == (B2, N2, O2)
    err2 = float(jnp.max(jnp.abs(out2 - ref2)))
    assert jnp.allclose(out2, ref2, atol=2e-4, rtol=2e-4), err2

    # bf16 fast-MXU path (recommended production configuration).
    out_bf = mlp_pallas(x.astype(jnp.bfloat16),
                        w1.astype(jnp.bfloat16), b1.astype(jnp.bfloat16),
                        w2.astype(jnp.bfloat16), b2.astype(jnp.bfloat16),
                        single_buffer_weights=single_buffer)
    jax.block_until_ready(out_bf)
    assert out_bf.shape == (B, N, C_out)
    err_bf = float(jnp.max(jnp.abs(out_bf.astype(jnp.float32) - ref)))
    assert err_bf < 0.1, err_bf

    print("KERNEL_OK")
</pallas_src>

<mosaic_0001>
module attributes {stable_mosaic.version = 11 : i64} {
  func.func @_mlp_kernel(%arg0: i32, %arg1: memref<32x128xf32, #tpu.memory_space<vmem>>, %arg2: memref<128x256xf32, #tpu.memory_space<vmem>>, %arg3: memref<1x256xf32, #tpu.memory_space<vmem>>, %arg4: memref<256x128xf32, #tpu.memory_space<vmem>>, %arg5: memref<1x128xf32, #tpu.memory_space<vmem>>, %arg6: memref<32x128xf32, #tpu.memory_space<vmem>>) attributes {dimension_semantics = [#tpu.dimension_semantics<parallel>], iteration_bounds = array<i64: 1>, scalar_prefetch = 0 : i64, scratch_operands = 0 : i64, tpu.core_type = #tpu.core_type<tc>, window_params = [{transform_indices = @transform_0, window_bounds = array<i64: 32, 128>}, {pipeline_mode = #tpu.pipeline_mode<synchronous>, transform_indices = @transform_1, window_bounds = array<i64: 128, 256>}, {pipeline_mode = #tpu.pipeline_mode<synchronous>, transform_indices = @transform_2, window_bounds = array<i64: 1, 256>}, {pipeline_mode = #tpu.pipeline_mode<synchronous>, transform_indices = @transform_3, window_bounds = array<i64: 256, 128>}, {pipeline_mode = #tpu.pipeline_mode<synchronous>, transform_indices = @transform_4, window_bounds = array<i64: 1, 128>}, {transform_indices = @transform_5, window_bounds = array<i64: 32, 128>}]} {
    %c0 = arith.constant 0 : index
    %c0_0 = arith.constant 0 : index
    %0 = vector.load %arg1[%c0, %c0_0] : memref<32x128xf32, #tpu.memory_space<vmem>>, vector<32x128xf32>
    %c0_1 = arith.constant 0 : index
    %c0_2 = arith.constant 0 : index
    %1 = vector.load %arg2[%c0_1, %c0_2] : memref<128x256xf32, #tpu.memory_space<vmem>>, vector<128x256xf32>
    %cst = arith.constant dense<0.000000e+00> : vector<32x256xf32>
    %2 = tpu.matmul %0, %1, %cst {dimension_numbers = #tpu.dot_dimension_numbers<[1], [0], [0], [1], [0, 0, 1, 1], [], []>} : vector<32x128xf32>, vector<128x256xf32>, vector<32x256xf32> -> vector<32x256xf32>
    %c0_3 = arith.constant 0 : index
    %c0_4 = arith.constant 0 : index
    %3 = vector.load %arg3[%c0_3, %c0_4] : memref<1x256xf32, #tpu.memory_space<vmem>>, vector<1x256xf32>
    %4 = vector.broadcast %3 : vector<1x256xf32> to vector<32x256xf32>
    %5 = arith.addf %2, %4 : vector<32x256xf32>
    %cst_5 = arith.constant 5.000000e-01 : f32
    %6 = vector.broadcast %cst_5 : f32 to vector<32x256xf32>
    %7 = arith.mulf %6, %5 : vector<32x256xf32>
    %cst_6 = arith.constant 0.707106769 : f32
    %8 = vector.broadcast %cst_6 : f32 to vector<32x256xf32>
    %9 = arith.mulf %5, %8 : vector<32x256xf32>
    %10 = math.erf %9 : vector<32x256xf32>
    %cst_7 = arith.constant 1.000000e+00 : f32
    %11 = vector.broadcast %cst_7 : f32 to vector<32x256xf32>
    %12 = arith.addf %11, %10 : vector<32x256xf32>
    %13 = arith.mulf %7, %12 : vector<32x256xf32>
    %c0_8 = arith.constant 0 : index
    %c0_9 = arith.constant 0 : index
    %14 = vector.load %arg4[%c0_8, %c0_9] : memref<256x128xf32, #tpu.memory_space<vmem>>, vector<256x128xf32>
    %cst_10 = arith.constant dense<0.000000e+00> : vector<32x128xf32>
    %15 = tpu.matmul %13, %14, %cst_10 {dimension_numbers = #tpu.dot_dimension_numbers<[1], [0], [0], [1], [0, 0, 1, 1], [], []>} : vector<32x256xf32>, vector<256x128xf32>, vector<32x128xf32> -> vector<32x128xf32>
    %c0_11 = arith.constant 0 : index
    %c0_12 = arith.constant 0 : index
    %16 = vector.load %arg5[%c0_11, %c0_12] : memref<1x128xf32, #tpu.memory_space<vmem>>, vector<1x128xf32>
    %17 = vector.broadcast %16 : vector<1x128xf32> to vector<32x128xf32>
    %18 = arith.addf %15, %17 : vector<32x128xf32>
    %c0_13 = arith.constant 0 : index
    %c0_14 = arith.constant 0 : index
    %19 = vector.load %arg6[%c0_13, %c0_14] : memref<32x128xf32, #tpu.memory_space<vmem>>, vector<32x128xf32>
    tpu.vector_store %arg6[%c0_13, %c0_14], %18 {strides = array<i32>} : memref<32x128xf32, #tpu.memory_space<vmem>>, vector<32x128xf32>,
    return
  }
  func.func @transform_0(%arg0: i32) -> (i32, i32) {
    %c0_i32 = arith.constant 0 : i32
    %c0_i32_0 = arith.constant 0 : i32
    return %arg0, %c0_i32 : i32, i32
  }
  func.func @transform_1(%arg0: i32) -> (i32, i32) {
    %c0_i32 = arith.constant 0 : i32
    %c0_i32_0 = arith.constant 0 : i32
    %c0_i32_1 = arith.constant 0 : i32
    return %c0_i32, %c0_i32_0 : i32, i32
  }
  func.func @transform_2(%arg0: i32) -> (i32, i32) {
    %c0_i32 = arith.constant 0 : i32
    %c0_i32_0 = arith.constant 0 : i32
    %c0_i32_1 = arith.constant 0 : i32
    return %c0_i32, %c0_i32_0 : i32, i32
  }
  func.func @transform_3(%arg0: i32) -> (i32, i32) {
    %c0_i32 = arith.constant 0 : i32
    %c0_i32_0 = arith.constant 0 : i32
    %c0_i32_1 = arith.constant 0 : i32
    return %c0_i32, %c0_i32_0 : i32, i32
  }
  func.func @transform_4(%arg0: i32) -> (i32, i32) {
    %c0_i32 = arith.constant 0 : i32
    %c0_i32_0 = arith.constant 0 : i32
    %c0_i32_1 = arith.constant 0 : i32
    return %c0_i32, %c0_i32_0 : i32, i32
  }
  func.func @transform_5(%arg0: i32) -> (i32, i32) {
    %c0_i32 = arith.constant 0 : i32
    %c0_i32_0 = arith.constant 0 : i32
    return %arg0, %c0_i32 : i32, i32
  }
}

module attributes {stable_mosaic.version = 11 : i64} {
  func.func @_mlp_kernel(%arg0: i32, %arg1: memref<32x128xf32, #tpu.memory_space<vmem>>, %arg2: memref<128x256xf32, #tpu.memory_space<vmem>>, %arg3: memref<1x256xf32, #tpu.memory_space<vmem>>, %arg4: memref<256x128xf32, #tpu.memory_space<vmem>>, %arg5: memref<1x128xf32, #tpu.memory_space<vmem>>, %arg6: memref<32x128xf32, #tpu.memory_space<vmem>>) attributes {dimension_semantics = [#tpu.dimension_semantics<parallel>], iteration_bounds = array<i64: 1>, scalar_prefetch = 0 : i64, scratch_operands = 0 : i64, tpu.core_type = #tpu.core_type<tc>, window_params = [{transform_indices = @transform_0, window_bounds = array<i64: 32, 128>}, {pipeline_mode = #tpu.pipeline_mode<synchronous>, transform_indices = @transform_1, window_bounds = array<i64: 128, 256>}, {pipeline_mode = #tpu.pipeline_mode<synchronous>, transform_indices = @transform_2, window_bounds = array<i64: 1, 256>}, {pipeline_mode = #tpu.pipeline_mode<synchronous>, transform_indices = @transform_3, window_bounds = array<i64: 256, 128>}, {pipeline_mode = #tpu.pipeline_mode<synchronous>, transform_indices = @transform_4, window_bounds = array<i64: 1, 128>}, {transform_indices = @transform_5, window_bounds = array<i64: 32, 128>}]} {
    %c0 = arith.constant 0 : index
    %c0_0 = arith.constant 0 : index
    %0 = vector.load %arg1[%c0, %c0_0] : memref<32x128xf32, #tpu.memory_space<vmem>>, vector<32x128xf32>
    %c0_1 = arith.constant 0 : index
    %c0_2 = arith.constant 0 : index
    %1 = vector.load %arg2[%c0_1, %c0_2] : memref<128x256xf32, #tpu.memory_space<vmem>>, vector<128x256xf32>
    %cst = arith.constant dense<0.000000e+00> : vector<32x256xf32>
    %2 = tpu.matmul %0, %1, %cst {dimension_numbers = #tpu.dot_dimension_numbers<[1], [0], [0], [1], [0, 0, 1, 1], [], []>} : vector<32x128xf32>, vector<128x256xf32>, vector<32x256xf32> -> vector<32x256xf32>
    %c0_3 = arith.constant 0 : index
    %c0_4 = arith.constant 0 : index
    %3 = vector.load %arg3[%c0_3, %c0_4] : memref<1x256xf32, #tpu.memory_space<vmem>>, vector<1x256xf32>
    %4 = vector.broadcast %3 : vector<1x256xf32> to vector<32x256xf32>
    %5 = arith.addf %2, %4 : vector<32x256xf32>
    %cst_5 = arith.constant 5.000000e-01 : f32
    %6 = vector.broadcast %cst_5 : f32 to vector<32x256xf32>
    %7 = arith.mulf %6, %5 : vector<32x256xf32>
    %cst_6 = arith.constant 0.707106769 : f32
    %8 = vector.broadcast %cst_6 : f32 to vector<32x256xf32>
    %9 = arith.mulf %5, %8 : vector<32x256xf32>
    %10 = math.erf %9 : vector<32x256xf32>
    %cst_7 = arith.constant 1.000000e+00 : f32
    %11 = vector.broadcast %cst_7 : f32 to vector<32x256xf32>
    %12 = arith.addf %11, %10 : vector<32x256xf32>
    %13 = arith.mulf %7, %12 : vector<32x256xf32>
    %c0_8 = arith.constant 0 : index
    %c0_9 = arith.constant 0 : index
    %14 = vector.load %arg4[%c0_8, %c0_9] : memref<256x128xf32, #tpu.memory_space<vmem>>, vector<256x128xf32>
    %cst_10 = arith.constant dense<0.000000e+00> : vector<32x128xf32>
    %15 = tpu.matmul %13, %14, %cst_10 {dimension_numbers = #tpu.dot_dimension_numbers<[1], [0], [0], [1], [0, 0, 1, 1], [], []>} : vector<32x256xf32>, vector<256x128xf32>, vector<32x128xf32> -> vector<32x128xf32>
    %c0_11 = arith.constant 0 : index
    %c0_12 = arith.constant 0 : index
    %16 = vector.load %arg5[%c0_11, %c0_12] : memref<1x128xf32, #tpu.memory_space<vmem>>, vector<1x128xf32>
    %17 = vector.broadcast %16 : vector<1x128xf32> to vector<32x128xf32>
    %18 = arith.addf %15, %17 : vector<32x128xf32>
    %c0_13 = arith.constant 0 : index
    %c0_14 = arith.constant 0 : index
    %19 = vector.load %arg6[%c0_13, %c0_14] : memref<32x128xf32, #tpu.memory_space<vmem>>, vector<32x128xf32>
    tpu.vector_store %arg6[%c0_13, %c0_14], %18 {strides = array<i32>} : memref<32x128xf32, #tpu.memory_space<vmem>>, vector<32x128xf32>,
    return
  }
  func.func @transform_0(%arg0: i32) -> (i32, i32) {
    %c0_i32 = arith.constant 0 : i32
    %c0_i32_0 = arith.constant 0 : i32
    return %arg0, %c0_i32 : i32, i32
  }
  func.func @transform_1(%arg0: i32) -> (i32, i32) {
    %c0_i32 = arith.constant 0 : i32
    %c0_i32_0 = arith.constant 0 : i32
    %c0_i32_1 = arith.constant 0 : i32
    return %c0_i32, %c0_i32_0 : i32, i32
  }
  func.func @transform_2(%arg0: i32) -> (i32, i32) {
    %c0_i32 = arith.constant 0 : i32
    %c0_i32_0 = arith.constant 0 : i32
    %c0_i32_1 = arith.constant 0 : i32
    return %c0_i32, %c0_i32_0 : i32, i32
  }
  func.func @transform_3(%arg0: i32) -> (i32, i32) {
    %c0_i32 = arith.constant 0 : i32
    %c0_i32_0 = arith.constant 0 : i32
    %c0_i32_1 = arith.constant 0 : i32
    return %c0_i32, %c0_i32_0 : i32, i32
  }
  func.func @transform_4(%arg0: i32) -> (i32, i32) {
    %c0_i32 = arith.constant 0 : i32
    %c0_i32_0 = arith.constant 0 : i32
    %c0_i32_1 = arith.constant 0 : i32
    return %c0_i32, %c0_i32_0 : i32, i32
  }
  func.func @transform_5(%arg0: i32) -> (i32, i32) {
    %c0_i32 = arith.constant 0 : i32
    %c0_i32_0 = arith.constant 0 : i32
    return %arg0, %c0_i32 : i32, i32
  }
}

</mosaic_0001>

<llo_original>
// kernel: mlp_pallas.1
$region0: #{mlp_pallas.1}
  #allocation0 [shape = 'u32[]', space=smem, size = 0x4, offset = 0x4, fixed_abs, tag = 'smem constant byte address 0x4 - core index']
  #allocation1 [shape = 'u32[72,128]{1,0:T(1,128)}', space=vmem, size = 0x9000, scoped, tag = 'internal scratch']
  %s0 = inlined_call_operand.hbm [shape: f32[32,128], index: 0, kind: input, shape index: {}]
  %s1 = inlined_call_operand.hbm [shape: f32[128,256], index: 1, kind: input, shape index: {}]
  %s2 = inlined_call_operand.vmem [shape: f32[1,256], index: 2, kind: input, shape index: {}]
  %s3 = inlined_call_operand.hbm [shape: f32[256,128], index: 3, kind: input, shape index: {}]
  %s4 = inlined_call_operand.vmem [shape: f32[1,128], index: 4, kind: input, shape index: {}]
  %s5 = inlined_call_operand.hbm [shape: f32[32,128], index: 5, kind: output, shape index: {}]
  %s6 = sld [smem:[#allocation0]]
  $region42: #{mlp_pallas.1} parent=0
    _
  %s8 = ssub.s32 1, %s6
  %s9 = scalar_select 0, %s8, %s6
  $region1: #{mlp_pallas.1} parent=0
    #allocation2 [shape = 'u8[16384]{0}', space=vmem, size = 0x4000, scoped, tag = 'input window, operand 0, single buffered']
    #allocation3 [shape = 's32[1]{0}', space=sflag, size = 0x4, scoped, tag = 'scoped memory for mlp_pallas.1']
    #allocation4 [shape = 's32[1]{0}', space=sflag, size = 0x4, scoped, tag = 'scoped memory for mlp_pallas.1']
    #allocation5 [shape = 'u8[131072]{0}', space=vmem, size = 0x20000, scoped, tag = 'input window, operand 1, single buffered']
    #allocation6 [shape = 's32[1]{0}', space=sflag, size = 0x4, scoped, tag = 'scoped memory for mlp_pallas.1']
    #allocation7 [shape = 'u8[131072]{0}', space=vmem, size = 0x20000, scoped, tag = 'input window, operand 3, single buffered']
    #allocation8 [shape = 'u8[16384]{0}', space=vmem, size = 0x4000, scoped, tag = 'output window, operand 0, single buffered']
    %10 = vsyncpa [#allocation3], 0
    %11 = vsyncpa [#allocation6], 0
    %12 = vsyncpa [#allocation4], 0
    // Predicated region
    $region2: #{mlp_pallas.1} parent=1 // pred_check
      _
    $region3: #{mlp_pallas.1} parent=1 // pred_check_branch
      %14 = sbr.rel (0) target = $region5
    $region4: #{mlp_pallas.1} parent=1 // pred_region
      %16 = vsyncadd [#allocation3], 0
      %s17 = sshll.u32 %s0, 4
      %s18 = int_to_ptr.hbm [resolvable:$true] %s17
      %s19 = sshll.u32 [#allocation2], 4
      %s20 = int_to_ptr.vmem [resolvable:$true] %s19
      %25 = dma.hbm_to_vmem [thread:$0]  %s18, 512, %s20, [#allocation3], 128, 128, 8
    $region5: #{mlp_pallas.1} parent=1 // pred_fallthru
      _
    // Predicated region
    $region6: #{mlp_pallas.1} parent=1 // pred_check
      _
    $region7: #{mlp_pallas.1} parent=1 // pred_check_branch
      %27 = sbr.rel (0) target = $region9
    $region8: #{mlp_pallas.1} parent=1 // pred_region
      %29 = vsyncadd [#allocation6], 0
      %s30 = sshll.u32 %s1, 4
      %s31 = int_to_ptr.hbm [resolvable:$true] %s30
      %s32 = sshll.u32 [#allocation5], 4
      %s33 = int_to_ptr.vmem [resolvable:$true] %s32
      %38 = dma.hbm_to_vmem [thread:$0]  %s31, 4096, %s33, [#allocation6], 256, 256, 16
    $region9: #{mlp_pallas.1} parent=1 // pred_fallthru
      _
    // Predicated region
    $region10: #{mlp_pallas.1} parent=1 // pred_check
      _
    $region11: #{mlp_pallas.1} parent=1 // pred_check_branch
      %40 = sbr.rel (0) target = $region13
    $region12: #{mlp_pallas.1} parent=1 // pred_region
      _
    $region13: #{mlp_pallas.1} parent=1 // pred_fallthru
      _
    // Predicated region
    $region14: #{mlp_pallas.1} parent=1 // pred_check
      _
    $region15: #{mlp_pallas.1} parent=1 // pred_check_branch
      %42 = sbr.rel (0) target = $region17
    $region16: #{mlp_pallas.1} parent=1 // pred_region
      %44 = vsyncadd [#allocation6], 0
      %s45 = sshll.u32 %s3, 4
      %s46 = int_to_ptr.hbm [resolvable:$true] %s45
      %s47 = sshll.u32 [#allocation7], 4
      %s48 = int_to_ptr.vmem [resolvable:$true] %s47
      %53 = dma.hbm_to_vmem [thread:$0]  %s46, 4096, %s48, [#allocation6], 128, 128, 8
    $region17: #{mlp_pallas.1} parent=1 // pred_fallthru
      _
    // Predicated region
    $region18: #{mlp_pallas.1} parent=1 // pred_check
      _
    $region19: #{mlp_pallas.1} parent=1 // pred_check_branch
      %55 = sbr.rel (0) target = $region21
    $region20: #{mlp_pallas.1} parent=1 // pred_region
      _
    $region21: #{mlp_pallas.1} parent=1 // pred_fallthru
      _
    // Predicated region
    $region22: #{mlp_pallas.1} parent=1 // pred_check
      _
    $region23: #{mlp_pallas.1} parent=1 // pred_check_branch
      %57 = sbr.rel (0) target = $region25
    $region24: #{mlp_pallas.1} parent=1 // pred_region
      %59 = dma.done [#allocation3], 512
    $region25: #{mlp_pallas.1} parent=1 // pred_fallthru
      _
    // Predicated region
    $region26: #{mlp_pallas.1} parent=1 // pred_check
      _
    $region27: #{mlp_pallas.1} parent=1 // pred_check_branch
      %61 = sbr.rel (0) target = $region29
    $region28: #{mlp_pallas.1} parent=1 // pred_region
      %63 = dma.done [#allocation6], 4096
    $region29: #{mlp_pallas.1} parent=1 // pred_fallthru
      _
    // Predicated region
    $region30: #{mlp_pallas.1} parent=1 // pred_check
      _
    $region31: #{mlp_pallas.1} parent=1 // pred_check_branch
      %65 = sbr.rel (0) target = $region33
    $region32: #{mlp_pallas.1} parent=1 // pred_region
      %67 = dma.done [#allocation6], 4096
    $region33: #{mlp_pallas.1} parent=1 // pred_fallthru
      _
    %v68 = vld [vmem:[#allocation2] sm:$0xff]
    %v69 = vld [vmem:[#allocation2 + $0x8] sm:$0xff]
    %v70 = vld [vmem:[#allocation2 + $0x10] sm:$0xff]
    %v71 = vld [vmem:[#allocation2 + $0x18] sm:$0xff]
    %v72 = vld [vmem:[#allocation5] sm:$0xff]
    %v73 = vld [vmem:[#allocation5 + $0x8] sm:$0xff]
    %v74 = vld [vmem:[#allocation5 + $0x10] sm:$0xff]
    %v75 = vld [vmem:[#allocation5 + $0x18] sm:$0xff]
    %v76 = vld [vmem:[#allocation5 + $0x20] sm:$0xff]
    %v77 = vld [vmem:[#allocation5 + $0x28] sm:$0xff]
    %v78 = vld [vmem:[#allocation5 + $0x30] sm:$0xff]
    %v79 = vld [vmem:[#allocation5 + $0x38] sm:$0xff]
    %v80 = vld [vmem:[#allocation5 + $0x40] sm:$0xff]
    %v81 = vld [vmem:[#allocation5 + $0x48] sm:$0xff]
    %v82 = vld [vmem:[#allocation5 + $0x50] sm:$0xff]
    %v83 = vld [vmem:[#allocation5 + $0x58] sm:$0xff]
    %v84 = vld [vmem:[#allocation5 + $0x60] sm:$0xff]
    %v85 = vld [vmem:[#allocation5 + $0x68] sm:$0xff]
    %v86 = vld [vmem:[#allocation5 + $0x70] sm:$0xff]
    %v87 = vld [vmem:[#allocation5 + $0x78] sm:$0xff]
    %v88 = vld [vmem:[#allocation5 + $0x80] sm:$0xff]
    %v89 = vld [vmem:[#allocation5 + $0x88] sm:$0xff]
    %v90 = vld [vmem:[#allocation5 + $0x90] sm:$0xff]
    %v91 = vld [vmem:[#allocation5 + $0x98] sm:$0xff]
    %v92 = vld [vmem:[#allocation5 + $0xa0] sm:$0xff]
    %v93 = vld [vmem:[#allocation5 + $0xa8] sm:$0xff]
    %v94 = vld [vmem:[#allocation5 + $0xb0] sm:$0xff]
    %v95 = vld [vmem:[#allocation5 + $0xb8] sm:$0xff]
    %v96 = vld [vmem:[#allocation5 + $0xc0] sm:$0xff]
    %v97 = vld [vmem:[#allocation5 + $0xc8] sm:$0xff]
    %v98 = vld [vmem:[#allocation5 + $0xd0] sm:$0xff]
    %v99 = vld [vmem:[#allocation5 + $0xd8] sm:$0xff]
    %v100 = vld [vmem:[#allocation5 + $0xe0] sm:$0xff]
    %v101 = vld [vmem:[#allocation5 + $0xe8] sm:$0xff]
    %v102 = vld [vmem:[#allocation5 + $0xf0] sm:$0xff]
    %v103 = vld [vmem:[#allocation5 + $0xf8] sm:$0xff]
    %v104 = vld [vmem:[%s2] sm:$0x3]
    %v106 = vperm.slane %v104, 0
    %v107 = vperm.slane %v104, 1
    %110 = vmatpush.msra.mxu0 %v102
    %111 = vmatpush.msra.mxu0 %v100
    %112 = vmatpush.msra.mxu0 %v98
    %113 = vmatpush.msra.mxu0 %v96
    %114 = vmatpush.msra.mxu0 %v94
    %115 = vmatpush.msra.mxu0 %v92
    %116 = vmatpush.msra.mxu0 %v90
    %117 = vmatpush.msra.mxu0 %v88
    %118 = vmatpush.msra.mxu0 %v86
    %119 = vmatpush.msra.mxu0 %v84
    %120 = vmatpush.msra.mxu0 %v82
    %121 = vmatpush.msra.mxu0 %v80
    %122 = vmatpush.msra.mxu0 %v78
    %123 = vmatpush.msra.mxu0 %v76
    %124 = vmatpush.msra.mxu0 %v74
    %125 = vmatpush.msra.mxu0 %v72
    %126 = vmatmul.f32.gmra.mxu0 %v68
    %v127 = vpop.f32.mrf.mxu0
    %v128 = vadd.f32 %v106, %v127
    %129 = vmatmul.f32.gmra.mxu0 %v69
    %v130 = vpop.f32.mrf.mxu0
    %v131 = vadd.f32 %v106, %v130
    %132 = vmatmul.f32.gmra.mxu0 %v70
    %v133 = vpop.f32.mrf.mxu0
    %v134 = vadd.f32 %v106, %v133
    %135 = vmatmul.f32.gmra.mxu0 %v71
    %v136 = vpop.f32.mrf.mxu0
    %v137 = vadd.f32 %v106, %v136
    %138 = vdwg.mxu0
    %139 = vmatpush.msra.mxu0 %v103
    %140 = vmatpush.msra.mxu0 %v101
    %141 = vmatpush.msra.mxu0 %v99
    %142 = vmatpush.msra.mxu0 %v97
    %143 = vmatpush.msra.mxu0 %v95
    %144 = vmatpush.msra.mxu0 %v93
    %145 = vmatpush.msra.mxu0 %v91
    %146 = vmatpush.msra.mxu0 %v89
    %147 = vmatpush.msra.mxu0 %v87
    %148 = vmatpush.msra.mxu0 %v85
    %149 = vmatpush.msra.mxu0 %v83
    %150 = vmatpush.msra.mxu0 %v81
    %151 = vmatpush.msra.mxu0 %v79
    %152 = vmatpush.msra.mxu0 %v77
    %153 = vmatpush.msra.mxu0 %v75
    %154 = vmatpush.msra.mxu0 %v73
    %155 = vmatmul.f32.gmra.mxu0 %v68
    %v156 = vpop.f32.mrf.mxu0
    %v157 = vadd.f32 %v107, %v156
    %158 = vmatmul.f32.gmra.mxu0 %v69
    %v159 = vpop.f32.mrf.mxu0
    %v160 = vadd.f32 %v107, %v159
    %161 = vmatmul.f32.gmra.mxu0 %v70
    %v162 = vpop.f32.mrf.mxu0
    %v163 = vadd.f32 %v107, %v162
    %164 = vmatmul.f32.gmra.mxu0 %v71
    %v165 = vpop.f32.mrf.mxu0
    %v166 = vadd.f32 %v107, %v165
    %167 = vdwg.mxu0
    %v168 = vmul.f32 %v128, 0.5
    %v169 = vmul.f32 %v157, 0.5
    %v170 = vmul.f32 %v131, 0.5
    %v171 = vmul.f32 %v160, 0.5
    %v172 = vmul.f32 %v134, 0.5
    %v173 = vmul.f32 %v163, 0.5
    %v174 = vmul.f32 %v137, 0.5
    %v175 = vmul.f32 %v166, 0.5
    %v176 = vmul.f32 %v128, 0.70710677
    %v177 = vmul.f32 %v157, 0.70710677
    %v178 = vmul.f32 %v131, 0.70710677
    %v179 = vmul.f32 %v160, 0.70710677
    %v180 = vmul.f32 %v134, 0.70710677
    %v181 = vmul.f32 %v163, 0.70710677
    %v182 = vmul.f32 %v137, 0.70710677
    %v183 = vmul.f32 %v166, 0.70710677
    %v184 = vmul.f32 %v176, %v176
    %v185 = vmin.f32 16.0, %v184
    %v186 = vmul.f32 %v185, 2.1237322e-06
    %v187 = vadd.f32 %v186, 0.00028619796
    %v188 = vmul.f32 %v185, %v187
    %v189 = vadd.f32 %v188, 0.0036580483
    %v190 = vmul.f32 %v185, %v189
    %v191 = vadd.f32 %v190, 0.05243302
    %v192 = vmul.f32 %v185, %v191
    %v193 = vadd.f32 %v192, 0.18741608
    %v194 = vmul.f32 %v185, %v193
    %v195 = vadd.f32 %v194, 1.1283791
    %v196 = vmul.f32 %v176, %v195
    %v197 = vmul.f32 %v185, 3.8918573e-05
    %v198 = vadd.f32 %v197, 0.001143296
    %v199 = vmul.f32 %v185, %v198
    %v200 = vadd.f32 %v199, 0.014752088
    %v201 = vmul.f32 %v185, %v200
    %v202 = vadd.f32 %v201, 0.112945676
    %v203 = vmul.f32 %v185, %v202
    %v204 = vadd.f32 %v203, 0.4994258
    %v205 = vmul.f32 %v185, %v204
    %v206 = vadd.f32 %v205, 1.0
    %v207 = vrcp.pop %v206
    %v208 = vmul.f32 %v206, %v207
    %v209 = vsub.f32 1.0, %v208
    %v210 = vmul.f32 %v207, %v209
    %v211 = vadd.f32 %v207, %v210
    %vm212 = vweird.f32 %v206
    %vm213 = vweird.f32 %v207
    %vm214 = vmor %vm212, %vm213
    %v215 = vsel %vm214, %v207, %v211
    %v216 = vand.u32 2147483647, %v206
    %vm217 = vcmp.eq.f32.partialorder %v216, 8.507059e+37
    %v218 = vand.u32 %v206, 2147483648
    %v219 = vor.u32 1.1754944e-38, %v218
    %v220 = vsel %vm217, %v219, %v215
    %v221 = vmul.f32 %v196, %v220
    %v222 = vmin.f32 %v221, 1.0
    %v223 = vmax.f32 %v222, -1.0
    %v224 = vmul.f32 %v177, %v177
    %v225 = vmin.f32 16.0, %v224
    %v226 = vmul.f32 %v225, 2.1237322e-06
    %v227 = vadd.f32 %v226, 0.00028619796
    %v228 = vmul.f32 %v225, %v227
    %v229 = vadd.f32 %v228, 0.0036580483
    %v230 = vmul.f32 %v225, %v229
    %v231 = vadd.f32 %v230, 0.05243302
    %v232 = vmul.f32 %v225, %v231
    %v233 = vadd.f32 %v232, 0.18741608
    %v234 = vmul.f32 %v225, %v233
    %v235 = vadd.f32 %v234, 1.1283791
    %v236 = vmul.f32 %v177, %v235
    %v237 = vmul.f32 %v225, 3.8918573e-05
    %v238 = vadd.f32 %v237, 0.001143296
    %v239 = vmul.f32 %v225, %v238
    %v240 = vadd.f32 %v239, 0.014752088
    %v241 = vmul.f32 %v225, %v240
    %v242 = vadd.f32 %v241, 0.112945676
    %v243 = vmul.f32 %v225, %v242
    %v244 = vadd.f32 %v243, 0.4994258
    %v245 = vmul.f32 %v225, %v244
    %v246 = vadd.f32 %v245, 1.0
    %v247 = vrcp.pop %v246
    %v248 = vmul.f32 %v246, %v247
    %v249 = vsub.f32 1.0, %v248
    %v250 = vmul.f32 %v247, %v249
    %v251 = vadd.f32 %v247, %v250
    %vm252 = vweird.f32 %v246
    %vm253 = vweird.f32 %v247
    %vm254 = vmor %vm252, %vm253
    %v255 = vsel %vm254, %v247, %v251
    %v256 = vand.u32 2147483647, %v246
    %vm257 = vcmp.eq.f32.partialorder %v256, 8.507059e+37
    %v258 = vand.u32 %v246, 2147483648
    %v259 = vor.u32 1.1754944e-38, %v258
    %v260 = vsel %vm257, %v259, %v255
    %v261 = vmul.f32 %v236, %v260
    %v262 = vmin.f32 %v261, 1.0
    %v263 = vmax.f32 %v262, -1.0
    %v264 = vmul.f32 %v178, %v178
    %v265 = vmin.f32 16.0, %v264
    %v266 = vmul.f32 %v265, 2.1237322e-06
    %v267 = vadd.f32 %v266, 0.00028619796
    %v268 = vmul.f32 %v265, %v267
    %v269 = vadd.f32 %v268, 0.0036580483
    %v270 = vmul.f32 %v265, %v269
    %v271 = vadd.f32 %v270, 0.05243302
    %v272 = vmul.f32 %v265, %v271
    %v273 = vadd.f32 %v272, 0.18741608
    %v274 = vmul.f32 %v265, %v273
    %v275 = vadd.f32 %v274, 1.1283791
    %v276 = vmul.f32 %v178, %v275
    %v277 = vmul.f32 %v265, 3.8918573e-05
    %v278 = vadd.f32 %v277, 0.001143296
    %v279 = vmul.f32 %v265, %v278
    %v280 = vadd.f32 %v279, 0.014752088
    %v281 = vmul.f32 %v265, %v280
    %v282 = vadd.f32 %v281, 0.112945676
    %v283 = vmul.f32 %v265, %v282
    %v284 = vadd.f32 %v283, 0.4994258
    %v285 = vmul.f32 %v265, %v284
    %v286 = vadd.f32 %v285, 1.0
    %v287 = vrcp.pop %v286
    %v288 = vmul.f32 %v286, %v287
    %v289 = vsub.f32 1.0, %v288
    %v290 = vmul.f32 %v287, %v289
    %v291 = vadd.f32 %v287, %v290
    %vm292 = vweird.f32 %v286
    %vm293 = vweird.f32 %v287
    %vm294 = vmor %vm292, %vm293
    %v295 = vsel %vm294, %v287, %v291
    %v296 = vand.u32 2147483647, %v286
    %vm297 = vcmp.eq.f32.partialorder %v296, 8.507059e+37
    %v298 = vand.u32 %v286, 2147483648
    %v299 = vor.u32 1.1754944e-38, %v298
    %v300 = vsel %vm297, %v299, %v295
    %v301 = vmul.f32 %v276, %v300
    %v302 = vmin.f32 %v301, 1.0
    %v303 = vmax.f32 %v302, -1.0
    %v304 = vmul.f32 %v179, %v179
    %v305 = vmin.f32 16.0, %v304
    %v306 = vmul.f32 %v305, 2.1237322e-06
    %v307 = vadd.f32 %v306, 0.00028619796
    %v308 = vmul.f32 %v305, %v307
    %v309 = vadd.f32 %v308, 0.0036580483
    %v310 = vmul.f32 %v305, %v309
    %v311 = vadd.f32 %v310, 0.05243302
    %v312 = vmul.f32 %v305, %v311
    %v313 = vadd.f32 %v312, 0.18741608
    %v314 = vmul.f32 %v305, %v313
    %v315 = vadd.f32 %v314, 1.1283791
    %v316 = vmul.f32 %v179, %v315
    %v317 = vmul.f32 %v305, 3.8918573e-05
    %v318 = vadd.f32 %v317, 0.001143296
    %v319 = vmul.f32 %v305, %v318
    %v320 = vadd.f32 %v319, 0.014752088
    %v321 = vmul.f32 %v305, %v320
    %v322 = vadd.f32 %v321, 0.112945676
    %v323 = vmul.f32 %v305, %v322
    %v324 = vadd.f32 %v323, 0.4994258
    %v325 = vmul.f32 %v305, %v324
    %v326 = vadd.f32 %v325, 1.0
    %v327 = vrcp.pop %v326
    %v328 = vmul.f32 %v326, %v327
    %v329 = vsub.f32 1.0, %v328
    %v330 = vmul.f32 %v327, %v329
    %v331 = vadd.f32 %v327, %v330
    %vm332 = vweird.f32 %v326
    %vm333 = vweird.f32 %v327
    %vm334 = vmor %vm332, %vm333
    %v335 = vsel %vm334, %v327, %v331
    %v336 = vand.u32 2147483647, %v326
    %vm337 = vcmp.eq.f32.partialorder %v336, 8.507059e+37
    %v338 = vand.u32 %v326, 2147483648
    %v339 = vor.u32 1.1754944e-38, %v338
    %v340 = vsel %vm337, %v339, %v335
    %v341 = vmul.f32 %v316, %v340
    %v342 = vmin.f32 %v341, 1.0
    %v343 = vmax.f32 %v342, -1.0
    %v344 = vmul.f32 %v180, %v180
    %v345 = vmin.f32 16.0, %v344
    %v346 = vmul.f32 %v345, 2.1237322e-06
    %v347 = vadd.f32 %v346, 0.00028619796
    %v348 = vmul.f32 %v345, %v347
    %v349 = vadd.f32 %v348, 0.0036580483
    %v350 = vmul.f32 %v345, %v349
    %v351 = vadd.f32 %v350, 0.05243302
    %v352 = vmul.f32 %v345, %v351
    %v353 = vadd.f32 %v352, 0.18741608
    %v354 = vmul.f32 %v345, %v353
    %v355 = vadd.f32 %v354, 1.1283791
    %v356 = vmul.f32 %v180, %v355
    %v357 = vmul.f32 %v345, 3.8918573e-05
    %v358 = vadd.f32 %v357, 0.001143296
    %v359 = vmul.f32 %v345, %v358
    %v360 = vadd.f32 %v359, 0.014752088
    %v361 = vmul.f32 %v345, %v360
    %v362 = vadd.f32 %v361, 0.112945676
    %v363 = vmul.f32 %v345, %v362
    %v364 = vadd.f32 %v363, 0.4994258
    %v365 = vmul.f32 %v345, %v364
    %v366 = vadd.f32 %v365, 1.0
    %v367 = vrcp.pop %v366
    %v368 = vmul.f32 %v366, %v367
    %v369 = vsub.f32 1.0, %v368
    %v370 = vmul.f32 %v367, %v369
    %v371 = vadd.f32 %v367, %v370
    %vm372 = vweird.f32 %v366
    %vm373 = vweird.f32 %v367
    %vm374 = vmor %vm372, %vm373
    %v375 = vsel %vm374, %v367, %v371
    %v376 = vand.u32 2147483647, %v366
    %vm377 = vcmp.eq.f32.partialorder %v376, 8.507059e+37
    %v378 = vand.u32 %v366, 2147483648
    %v379 = vor.u32 1.1754944e-38, %v378
    %v380 = vsel %vm377, %v379, %v375
    %v381 = vmul.f32 %v356, %v380
    %v382 = vmin.f32 %v381, 1.0
    %v383 = vmax.f32 %v382, -1.0
    %v384 = vmul.f32 %v181, %v181
    %v385 = vmin.f32 16.0, %v384
    %v386 = vmul.f32 %v385, 2.1237322e-06
    %v387 = vadd.f32 %v386, 0.00028619796
    %v388 = vmul.f32 %v385, %v387
    %v389 = vadd.f32 %v388, 0.0036580483
    %v390 = vmul.f32 %v385, %v389
    %v391 = vadd.f32 %v390, 0.05243302
    %v392 = vmul.f32 %v385, %v391
    %v393 = vadd.f32 %v392, 0.18741608
    %v394 = vmul.f32 %v385, %v393
    %v395 = vadd.f32 %v394, 1.1283791
    %v396 = vmul.f32 %v181, %v395
    %v397 = vmul.f32 %v385, 3.8918573e-05
    %v398 = vadd.f32 %v397, 0.001143296
    %v399 = vmul.f32 %v385, %v398
    %v400 = vadd.f32 %v399, 0.014752088
    %v401 = vmul.f32 %v385, %v400
    %v402 = vadd.f32 %v401, 0.112945676
    %v403 = vmul.f32 %v385, %v402
    %v404 = vadd.f32 %v403, 0.4994258
    %v405 = vmul.f32 %v385, %v404
    %v406 = vadd.f32 %v405, 1.0
    %v407 = vrcp.pop %v406
    %v408 = vmul.f32 %v406, %v407
    %v409 = vsub.f32 1.0, %v408
    %v410 = vmul.f32 %v407, %v409
    %v411 = vadd.f32 %v407, %v410
    %vm412 = vweird.f32 %v406
    %vm413 = vweird.f32 %v407
    %vm414 = vmor %vm412, %vm413
    %v415 = vsel %vm414, %v407, %v411
    %v416 = vand.u32 2147483647, %v406
    %vm417 = vcmp.eq.f32.partialorder %v416, 8.507059e+37
    %v418 = vand.u32 %v406, 2147483648
    %v419 = vor.u32 1.1754944e-38, %v418
    %v420 = vsel %vm417, %v419, %v415
    %v421 = vmul.f32 %v396, %v420
    %v422 = vmin.f32 %v421, 1.0
    %v423 = vmax.f32 %v422, -1.0
    %v424 = vmul.f32 %v182, %v182
    %v425 = vmin.f32 16.0, %v424
    %v426 = vmul.f32 %v425, 2.1237322e-06
    %v427 = vadd.f32 %v426, 0.00028619796
    %v428 = vmul.f32 %v425, %v427
    %v429 = vadd.f32 %v428, 0.0036580483
    %v430 = vmul.f32 %v425, %v429
    %v431 = vadd.f32 %v430, 0.05243302
    %v432 = vmul.f32 %v425, %v431
    %v433 = vadd.f32 %v432, 0.18741608
    %v434 = vmul.f32 %v425, %v433
    %v435 = vadd.f32 %v434, 1.1283791
    %v436 = vmul.f32 %v182, %v435
    %v437 = vmul.f32 %v425, 3.8918573e-05
    %v438 = vadd.f32 %v437, 0.001143296
    %v439 = vmul.f32 %v425, %v438
    %v440 = vadd.f32 %v439, 0.014752088
    %v441 = vmul.f32 %v425, %v440
    %v442 = vadd.f32 %v441, 0.112945676
    %v443 = vmul.f32 %v425, %v442
    %v444 = vadd.f32 %v443, 0.4994258
    %v445 = vmul.f32 %v425, %v444
    %v446 = vadd.f32 %v445, 1.0
    %v447 = vrcp.pop %v446
    %v448 = vmul.f32 %v446, %v447
    %v449 = vsub.f32 1.0, %v448
    %v450 = vmul.f32 %v447, %v449
    %v451 = vadd.f32 %v447, %v450
    %vm452 = vweird.f32 %v446
    %vm453 = vweird.f32 %v447
    %vm454 = vmor %vm452, %vm453
    %v455 = vsel %vm454, %v447, %v451
    %v456 = vand.u32 2147483647, %v446
    %vm457 = vcmp.eq.f32.partialorder %v456, 8.507059e+37
    %v458 = vand.u32 %v446, 2147483648
    %v459 = vor.u32 1.1754944e-38, %v458
    %v460 = vsel %vm457, %v459, %v455
    %v461 = vmul.f32 %v436, %v460
    %v462 = vmin.f32 %v461, 1.0
    %v463 = vmax.f32 %v462, -1.0
    %v464 = vmul.f32 %v183, %v183
    %v465 = vmin.f32 16.0, %v464
    %v466 = vmul.f32 %v465, 2.1237322e-06
    %v467 = vadd.f32 %v466, 0.00028619796
    %v468 = vmul.f32 %v465, %v467
    %v469 = vadd.f32 %v468, 0.0036580483
    %v470 = vmul.f32 %v465, %v469
    %v471 = vadd.f32 %v470, 0.05243302
    %v472 = vmul.f32 %v465, %v471
    %v473 = vadd.f32 %v472, 0.18741608
    %v474 = vmul.f32 %v465, %v473
    %v475 = vadd.f32 %v474, 1.1283791
    %v476 = vmul.f32 %v183, %v475
    %v477 = vmul.f32 %v465, 3.8918573e-05
    %v478 = vadd.f32 %v477, 0.001143296
    %v479 = vmul.f32 %v465, %v478
    %v480 = vadd.f32 %v479, 0.014752088
    %v481 = vmul.f32 %v465, %v480
    %v482 = vadd.f32 %v481, 0.112945676
    %v483 = vmul.f32 %v465, %v482
    %v484 = vadd.f32 %v483, 0.4994258
    %v485 = vmul.f32 %v465, %v484
    %v486 = vadd.f32 %v485, 1.0
    %v487 = vrcp.pop %v486
    %v488 = vmul.f32 %v486, %v487
    %v489 = vsub.f32 1.0, %v488
    %v490 = vmul.f32 %v487, %v489
    %v491 = vadd.f32 %v487, %v490
    %vm492 = vweird.f32 %v486
    %vm493 = vweird.f32 %v487
    %vm494 = vmor %vm492, %vm493
    %v495 = vsel %vm494, %v487, %v491
    %v496 = vand.u32 2147483647, %v486
    %vm497 = vcmp.eq.f32.partialorder %v496, 8.507059e+37
    %v498 = vand.u32 %v486, 2147483648
    %v499 = vor.u32 1.1754944e-38, %v498
    %v500 = vsel %vm497, %v499, %v495
    %v501 = vmul.f32 %v476, %v500
    %v502 = vmin.f32 %v501, 1.0
    %v503 = vmax.f32 %v502, -1.0
    %v504 = vadd.f32 %v223, 1.0
    %v505 = vadd.f32 %v263, 1.0
    %v506 = vadd.f32 %v303, 1.0
    %v507 = vadd.f32 %v343, 1.0
    %v508 = vadd.f32 %v383, 1.0
    %v509 = vadd.f32 %v423, 1.0
    %v510 = vadd.f32 %v463, 1.0
    %v511 = vadd.f32 %v503, 1.0
    %v512 = vmul.f32 %v168, %v504
    %v513 = vmul.f32 %v169, %v505
    %v514 = vmul.f32 %v170, %v506
    %v515 = vmul.f32 %v171, %v507
    %v516 = vmul.f32 %v172, %v508
    %v517 = vmul.f32 %v173, %v509
    %v518 = vmul.f32 %v174, %v510
    %v519 = vmul.f32 %v175, %v511
    %v520 = vld [vmem:[#allocation7] sm:$0xff]
    %v521 = vld [vmem:[#allocation7 + $0x8] sm:$0xff]
    %v522 = vld [vmem:[#allocation7 + $0x10] sm:$0xff]
    %v523 = vld [vmem:[#allocation7 + $0x18] sm:$0xff]
    %v524 = vld [vmem:[#allocation7 + $0x20] sm:$0xff]
    %v525 = vld [vmem:[#allocation7 + $0x28] sm:$0xff]
    %v526 = vld [vmem:[#allocation7 + $0x30] sm:$0xff]
    %v527 = vld [vmem:[#allocation7 + $0x38] sm:$0xff]
    %v528 = vld [vmem:[#allocation7 + $0x40] sm:$0xff]
    %v529 = vld [vmem:[#allocation7 + $0x48] sm:$0xff]
    %v530 = vld [vmem:[#allocation7 + $0x50] sm:$0xff]
    %v531 = vld [vmem:[#allocation7 + $0x58] sm:$0xff]
    %v532 = vld [vmem:[#allocation7 + $0x60] sm:$0xff]
    %v533 = vld [vmem:[#allocation7 + $0x68] sm:$0xff]
    %v534 = vld [vmem:[#allocation7 + $0x70] sm:$0xff]
    %v535 = vld [vmem:[#allocation7 + $0x78] sm:$0xff]
    %v536 = vld [vmem:[#allocation7 + $0x80] sm:$0xff]
    %v537 = vld [vmem:[#allocation7 + $0x88] sm:$0xff]
    %v538 = vld [vmem:[#allocation7 + $0x90] sm:$0xff]
    %v539 = vld [vmem:[#allocation7 + $0x98] sm:$0xff]
    %v540 = vld [vmem:[#allocation7 + $0xa0] sm:$0xff]
    %v541 = vld [vmem:[#allocation7 + $0xa8] sm:$0xff]
    %v542 = vld [vmem:[#allocation7 + $0xb0] sm:$0xff]
    %v543 = vld [vmem:[#allocation7 + $0xb8] sm:$0xff]
    %v544 = vld [vmem:[#allocation7 + $0xc0] sm:$0xff]
    %v545 = vld [vmem:[#allocation7 + $0xc8] sm:$0xff]
    %v546 = vld [vmem:[#allocation7 + $0xd0] sm:$0xff]
    %v547 = vld [vmem:[#allocation7 + $0xd8] sm:$0xff]
    %v548 = vld [vmem:[#allocation7 + $0xe0] sm:$0xff]
    %v549 = vld [vmem:[#allocation7 + $0xe8] sm:$0xff]
    %v550 = vld [vmem:[#allocation7 + $0xf0] sm:$0xff]
    %v551 = vld [vmem:[#allocation7 + $0xf8] sm:$0xff]
    %v552 = vld [vmem:[%s4] sm:$0x1]
    %v554 = vperm.slane %v552, 0
    %556 = vmatpush.msra.mxu0 %v535
    %557 = vmatpush.msra.mxu0 %v534
    %558 = vmatpush.msra.mxu0 %v533
    %559 = vmatpush.msra.mxu0 %v532
    %560 = vmatpush.msra.mxu0 %v531
    %561 = vmatpush.msra.mxu0 %v530
    %562 = vmatpush.msra.mxu0 %v529
    %563 = vmatpush.msra.mxu0 %v528
    %564 = vmatpush.msra.mxu0 %v527
    %565 = vmatpush.msra.mxu0 %v526
    %566 = vmatpush.msra.mxu0 %v525
    %567 = vmatpush.msra.mxu0 %v524
    %568 = vmatpush.msra.mxu0 %v523
    %569 = vmatpush.msra.mxu0 %v522
    %570 = vmatpush.msra.mxu0 %v521
    %571 = vmatpush.msra.mxu0 %v520
    %572 = vmatmul.f32.gmra.mxu0 %v512
    %v573 = vpop.f32.mrf.mxu0
    %v574 = vadd.f32 %v554, %v573
    %575 = vmatmul.f32.gmra.mxu0 %v514
    %v576 = vpop.f32.mrf.mxu0
    %v577 = vadd.f32 %v554, %v576
    %578 = vmatmul.f32.gmra.mxu0 %v516
    %v579 = vpop.f32.mrf.mxu0
    %v580 = vadd.f32 %v554, %v579
    %581 = vmatmul.f32.gmra.mxu0 %v518
    %v582 = vpop.f32.mrf.mxu0
    %v583 = vadd.f32 %v554, %v582
    %584 = vdwg.mxu0
    %585 = vmatpush.msra.mxu0 %v551
    %586 = vmatpush.msra.mxu0 %v550
    %587 = vmatpush.msra.mxu0 %v549
    %588 = vmatpush.msra.mxu0 %v548
    %589 = vmatpush.msra.mxu0 %v547
    %590 = vmatpush.msra.mxu0 %v546
    %591 = vmatpush.msra.mxu0 %v545
    %592 = vmatpush.msra.mxu0 %v544
    %593 = vmatpush.msra.mxu0 %v543
    %594 = vmatpush.msra.mxu0 %v542
    %595 = vmatpush.msra.mxu0 %v541
    %596 = vmatpush.msra.mxu0 %v540
    %597 = vmatpush.msra.mxu0 %v539
    %598 = vmatpush.msra.mxu0 %v538
    %599 = vmatpush.msra.mxu0 %v537
    %600 = vmatpush.msra.mxu0 %v536
    %601 = vmatmul.f32.gmra.mxu0 %v513
    %v602 = vpop.f32.mrf.mxu0
    %v603 = vadd.f32 %v574, %v602
    %604 = vmatmul.f32.gmra.mxu0 %v515
    %v605 = vpop.f32.mrf.mxu0
    %v606 = vadd.f32 %v577, %v605
    %607 = vmatmul.f32.gmra.mxu0 %v517
    %v608 = vpop.f32.mrf.mxu0
    %v609 = vadd.f32 %v580, %v608
    %610 = vmatmul.f32.gmra.mxu0 %v519
    %v611 = vpop.f32.mrf.mxu0
    %v612 = vadd.f32 %v583, %v611
    %613 = vdwg.mxu0
    %614 = vst [vmem:[#allocation8] sm:$0xff] %v603
    %615 = vst [vmem:[#allocation8 + $0x8] sm:$0xff] %v606
    %616 = vst [vmem:[#allocation8 + $0x10] sm:$0xff] %v609
    %617 = vst [vmem:[#allocation8 + $0x18] sm:$0xff] %v612
    // Predicated region
    $region34: #{mlp_pallas.1} parent=1 // pred_check
      _
    $region35: #{mlp_pallas.1} parent=1 // pred_check_branch
      %619 = sbr.rel (0) target = $region37
    $region36: #{mlp_pallas.1} parent=1 // pred_region
      %621 = vsyncadd [#allocation4], 0
      %s622 = sshll.u32 [#allocation8], 4
      %s623 = int_to_ptr.vmem [resolvable:$true] %s622
      %s624 = sshll.u32 %s5, 4
      %s625 = int_to_ptr.hbm [resolvable:$true] %s624
      %630 = dma.vmem_to_hbm [thread:$0]  %s623, 512, %s625, [#allocation4], 128, 128, 8
    $region37: #{mlp_pallas.1} parent=1 // pred_fallthru
      _
    // Predicated region
    $region38: #{mlp_pallas.1} parent=1 // pred_check
      _
    $region39: #{mlp_pallas.1} parent=1 // pred_check_branch
      %632 = sbr.rel (0) target = $region41
    $region40: #{mlp_pallas.1} parent=1 // pred_region
      %634 = dma.done [#allocation4], 512
    $region41: #{mlp_pallas.1} parent=1 // pred_fallthru
      _
    %635 = vsyncpa [#allocation3], 1
    %636 = vsyncpa [#allocation6], 1
    %637 = vsyncpa [#allocation4], 1

// kernel: mlp_pallas.1
$region0: #{mlp_pallas.1}
  #allocation0 [shape = 'u32[]', space=smem, size = 0x4, offset = 0x4, fixed_abs, tag = 'smem constant byte address 0x4 - core index']
  #allocation1 [shape = 'u32[72,128]{1,0:T(1,128)}', space=vmem, size = 0x9000, scoped, tag = 'internal scratch']
  %s0 = inlined_call_operand.hbm [shape: f32[32,128], index: 0, kind: input, shape index: {}]
  %s1 = inlined_call_operand.hbm [shape: f32[128,256], index: 1, kind: input, shape index: {}]
  %s2 = inlined_call_operand.vmem [shape: f32[1,256], index: 2, kind: input, shape index: {}]
  %s3 = inlined_call_operand.hbm [shape: f32[256,128], index: 3, kind: input, shape index: {}]
  %s4 = inlined_call_operand.vmem [shape: f32[1,128], index: 4, kind: input, shape index: {}]
  %s5 = inlined_call_operand.hbm [shape: f32[32,128], index: 5, kind: output, shape index: {}]
  %s6 = sld [smem:[#allocation0]]
  $region42: #{mlp_pallas.1} parent=0
    _
  %s8 = ssub.s32 1, %s6
  %s9 = scalar_select 0, %s8, %s6
  $region1: #{mlp_pallas.1} parent=0
    #allocation2 [shape = 'u8[16384]{0}', space=vmem, size = 0x4000, scoped, tag = 'input window, operand 0, single buffered']
    #allocation3 [shape = 's32[1]{0}', space=sflag, size = 0x4, scoped, tag = 'scoped memory for mlp_pallas.1']
    #allocation4 [shape = 's32[1]{0}', space=sflag, size = 0x4, scoped, tag = 'scoped memory for mlp_pallas.1']
    #allocation5 [shape = 'u8[131072]{0}', space=vmem, size = 0x20000, scoped, tag = 'input window, operand 1, single buffered']
    #allocation6 [shape = 's32[1]{0}', space=sflag, size = 0x4, scoped, tag = 'scoped memory for mlp_pallas.1']
    #allocation7 [shape = 'u8[131072]{0}', space=vmem, size = 0x20000, scoped, tag = 'input window, operand 3, single buffered']
    #allocation8 [shape = 'u8[16384]{0}', space=vmem, size = 0x4000, scoped, tag = 'output window, operand 0, single buffered']
    %10 = vsyncpa [#allocation3], 0
    %11 = vsyncpa [#allocation6], 0
    %12 = vsyncpa [#allocation4], 0
    // Predicated region
    $region2: #{mlp_pallas.1} parent=1 // pred_check
      _
    $region3: #{mlp_pallas.1} parent=1 // pred_check_branch
      %14 = sbr.rel (0) target = $region5
    $region4: #{mlp_pallas.1} parent=1 // pred_region
      %16 = vsyncadd [#allocation3], 0
      %s17 = sshll.u32 %s0, 4
      %s18 = int_to_ptr.hbm [resolvable:$true] %s17
      %s19 = sshll.u32 [#allocation2], 4
      %s20 = int_to_ptr.vmem [resolvable:$true] %s19
      %25 = dma.hbm_to_vmem [thread:$0]  %s18, 512, %s20, [#allocation3], 128, 128, 8
    $region5: #{mlp_pallas.1} parent=1 // pred_fallthru
      _
    // Predicated region
    $region6: #{mlp_pallas.1} parent=1 // pred_check
      _
    $region7: #{mlp_pallas.1} parent=1 // pred_check_branch
      %27 = sbr.rel (0) target = $region9
    $region8: #{mlp_pallas.1} parent=1 // pred_region
      %29 = vsyncadd [#allocation6], 0
      %s30 = sshll.u32 %s1, 4
      %s31 = int_to_ptr.hbm [resolvable:$true] %s30
      %s32 = sshll.u32 [#allocation5], 4
      %s33 = int_to_ptr.vmem [resolvable:$true] %s32
      %38 = dma.hbm_to_vmem [thread:$0]  %s31, 4096, %s33, [#allocation6], 256, 256, 16
    $region9: #{mlp_pallas.1} parent=1 // pred_fallthru
      _
    // Predicated region
    $region10: #{mlp_pallas.1} parent=1 // pred_check
      _
    $region11: #{mlp_pallas.1} parent=1 // pred_check_branch
      %40 = sbr.rel (0) target = $region13
    $region12: #{mlp_pallas.1} parent=1 // pred_region
      _
    $region13: #{mlp_pallas.1} parent=1 // pred_fallthru
      _
    // Predicated region
    $region14: #{mlp_pallas.1} parent=1 // pred_check
      _
    $region15: #{mlp_pallas.1} parent=1 // pred_check_branch
      %42 = sbr.rel (0) target = $region17
    $region16: #{mlp_pallas.1} parent=1 // pred_region
      %44 = vsyncadd [#allocation6], 0
      %s45 = sshll.u32 %s3, 4
      %s46 = int_to_ptr.hbm [resolvable:$true] %s45
      %s47 = sshll.u32 [#allocation7], 4
      %s48 = int_to_ptr.vmem [resolvable:$true] %s47
      %53 = dma.hbm_to_vmem [thread:$0]  %s46, 4096, %s48, [#allocation6], 128, 128, 8
    $region17: #{mlp_pallas.1} parent=1 // pred_fallthru
      _
    // Predicated region
    $region18: #{mlp_pallas.1} parent=1 // pred_check
      _
    $region19: #{mlp_pallas.1} parent=1 // pred_check_branch
      %55 = sbr.rel (0) target = $region21
    $region20: #{mlp_pallas.1} parent=1 // pred_region
      _
    $region21: #{mlp_pallas.1} parent=1 // pred_fallthru
      _
    // Predicated region
    $region22: #{mlp_pallas.1} parent=1 // pred_check
      _
    $region23: #{mlp_pallas.1} parent=1 // pred_check_branch
      %57 = sbr.rel (0) target = $region25
    $region24: #{mlp_pallas.1} parent=1 // pred_region
      %59 = dma.done [#allocation3], 512
    $region25: #{mlp_pallas.1} parent=1 // pred_fallthru
      _
    // Predicated region
    $region26: #{mlp_pallas.1} parent=1 // pred_check
      _
    $region27: #{mlp_pallas.1} parent=1 // pred_check_branch
      %61 = sbr.rel (0) target = $region29
    $region28: #{mlp_pallas.1} parent=1 // pred_region
      %63 = dma.done [#allocation6], 4096
    $region29: #{mlp_pallas.1} parent=1 // pred_fallthru
      _
    // Predicated region
    $region30: #{mlp_pallas.1} parent=1 // pred_check
      _
    $region31: #{mlp_pallas.1} parent=1 // pred_check_branch
      %65 = sbr.rel (0) target = $region33
    $region32: #{mlp_pallas.1} parent=1 // pred_region
      %67 = dma.done [#allocation6], 4096
    $region33: #{mlp_pallas.1} parent=1 // pred_fallthru
      _
    %v68 = vld [vmem:[#allocation2] sm:$0xff]
    %v69 = vld [vmem:[#allocation2 + $0x8] sm:$0xff]
    %v70 = vld [vmem:[#allocation2 + $0x10] sm:$0xff]
    %v71 = vld [vmem:[#allocation2 + $0x18] sm:$0xff]
    %v72 = vld [vmem:[#allocation5] sm:$0xff]
    %v73 = vld [vmem:[#allocation5 + $0x8] sm:$0xff]
    %v74 = vld [vmem:[#allocation5 + $0x10] sm:$0xff]
    %v75 = vld [vmem:[#allocation5 + $0x18] sm:$0xff]
    %v76 = vld [vmem:[#allocation5 + $0x20] sm:$0xff]
    %v77 = vld [vmem:[#allocation5 + $0x28] sm:$0xff]
    %v78 = vld [vmem:[#allocation5 + $0x30] sm:$0xff]
    %v79 = vld [vmem:[#allocation5 + $0x38] sm:$0xff]
    %v80 = vld [vmem:[#allocation5 + $0x40] sm:$0xff]
    %v81 = vld [vmem:[#allocation5 + $0x48] sm:$0xff]
    %v82 = vld [vmem:[#allocation5 + $0x50] sm:$0xff]
    %v83 = vld [vmem:[#allocation5 + $0x58] sm:$0xff]
    %v84 = vld [vmem:[#allocation5 + $0x60] sm:$0xff]
    %v85 = vld [vmem:[#allocation5 + $0x68] sm:$0xff]
    %v86 = vld [vmem:[#allocation5 + $0x70] sm:$0xff]
    %v87 = vld [vmem:[#allocation5 + $0x78] sm:$0xff]
    %v88 = vld [vmem:[#allocation5 + $0x80] sm:$0xff]
    %v89 = vld [vmem:[#allocation5 + $0x88] sm:$0xff]
    %v90 = vld [vmem:[#allocation5 + $0x90] sm:$0xff]
    %v91 = vld [vmem:[#allocation5 + $0x98] sm:$0xff]
    %v92 = vld [vmem:[#allocation5 + $0xa0] sm:$0xff]
    %v93 = vld [vmem:[#allocation5 + $0xa8] sm:$0xff]
    %v94 = vld [vmem:[#allocation5 + $0xb0] sm:$0xff]
    %v95 = vld [vmem:[#allocation5 + $0xb8] sm:$0xff]
    %v96 = vld [vmem:[#allocation5 + $0xc0] sm:$0xff]
    %v97 = vld [vmem:[#allocation5 + $0xc8] sm:$0xff]
    %v98 = vld [vmem:[#allocation5 + $0xd0] sm:$0xff]
    %v99 = vld [vmem:[#allocation5 + $0xd8] sm:$0xff]
    %v100 = vld [vmem:[#allocation5 + $0xe0] sm:$0xff]
    %v101 = vld [vmem:[#allocation5 + $0xe8] sm:$0xff]
    %v102 = vld [vmem:[#allocation5 + $0xf0] sm:$0xff]
    %v103 = vld [vmem:[#allocation5 + $0xf8] sm:$0xff]
    %v104 = vld [vmem:[%s2] sm:$0x3]
    %v106 = vperm.slane %v104, 0
    %v107 = vperm.slane %v104, 1
    %110 = vmatpush.msra.mxu0 %v102
    %111 = vmatpush.msra.mxu0 %v100
    %112 = vmatpush.msra.mxu0 %v98
    %113 = vmatpush.msra.mxu0 %v96
    %114 = vmatpush.msra.mxu0 %v94
    %115 = vmatpush.msra.mxu0 %v92
    %116 = vmatpush.msra.mxu0 %v90
    %117 = vmatpush.msra.mxu0 %v88
    %118 = vmatpush.msra.mxu0 %v86
    %119 = vmatpush.msra.mxu0 %v84
    %120 = vmatpush.msra.mxu0 %v82
    %121 = vmatpush.msra.mxu0 %v80
    %122 = vmatpush.msra.mxu0 %v78
    %123 = vmatpush.msra.mxu0 %v76
    %124 = vmatpush.msra.mxu0 %v74
    %125 = vmatpush.msra.mxu0 %v72
    %126 = vmatmul.f32.gmra.mxu0 %v68
    %v127 = vpop.f32.mrf.mxu0
    %v128 = vadd.f32 %v106, %v127
    %129 = vmatmul.f32.gmra.mxu0 %v69
    %v130 = vpop.f32.mrf.mxu0
    %v131 = vadd.f32 %v106, %v130
    %132 = vmatmul.f32.gmra.mxu0 %v70
    %v133 = vpop.f32.mrf.mxu0
    %v134 = vadd.f32 %v106, %v133
    %135 = vmatmul.f32.gmra.mxu0 %v71
    %v136 = vpop.f32.mrf.mxu0
    %v137 = vadd.f32 %v106, %v136
    %138 = vdwg.mxu0
    %139 = vmatpush.msra.mxu0 %v103
    %140 = vmatpush.msra.mxu0 %v101
    %141 = vmatpush.msra.mxu0 %v99
    %142 = vmatpush.msra.mxu0 %v97
    %143 = vmatpush.msra.mxu0 %v95
    %144 = vmatpush.msra.mxu0 %v93
    %145 = vmatpush.msra.mxu0 %v91
    %146 = vmatpush.msra.mxu0 %v89
    %147 = vmatpush.msra.mxu0 %v87
    %148 = vmatpush.msra.mxu0 %v85
    %149 = vmatpush.msra.mxu0 %v83
    %150 = vmatpush.msra.mxu0 %v81
    %151 = vmatpush.msra.mxu0 %v79
    %152 = vmatpush.msra.mxu0 %v77
    %153 = vmatpush.msra.mxu0 %v75
    %154 = vmatpush.msra.mxu0 %v73
    %155 = vmatmul.f32.gmra.mxu0 %v68
    %v156 = vpop.f32.mrf.mxu0
    %v157 = vadd.f32 %v107, %v156
    %158 = vmatmul.f32.gmra.mxu0 %v69
    %v159 = vpop.f32.mrf.mxu0
    %v160 = vadd.f32 %v107, %v159
    %161 = vmatmul.f32.gmra.mxu0 %v70
    %v162 = vpop.f32.mrf.mxu0
    %v163 = vadd.f32 %v107, %v162
    %164 = vmatmul.f32.gmra.mxu0 %v71
    %v165 = vpop.f32.mrf.mxu0
    %v166 = vadd.f32 %v107, %v165
    %167 = vdwg.mxu0
    %v168 = vmul.f32 %v128, 0.5
    %v169 = vmul.f32 %v157, 0.5
    %v170 = vmul.f32 %v131, 0.5
    %v171 = vmul.f32 %v160, 0.5
    %v172 = vmul.f32 %v134, 0.5
    %v173 = vmul.f32 %v163, 0.5
    %v174 = vmul.f32 %v137, 0.5
    %v175 = vmul.f32 %v166, 0.5
    %v176 = vmul.f32 %v128, 0.70710677
    %v177 = vmul.f32 %v157, 0.70710677
    %v178 = vmul.f32 %v131, 0.70710677
    %v179 = vmul.f32 %v160, 0.70710677
    %v180 = vmul.f32 %v134, 0.70710677
    %v181 = vmul.f32 %v163, 0.70710677
    %v182 = vmul.f32 %v137, 0.70710677
    %v183 = vmul.f32 %v166, 0.70710677
    %v184 = vmul.f32 %v176, %v176
    %v185 = vmin.f32 16.0, %v184
    %v186 = vmul.f32 %v185, 2.1237322e-06
    %v187 = vadd.f32 %v186, 0.00028619796
    %v188 = vmul.f32 %v185, %v187
    %v189 = vadd.f32 %v188, 0.0036580483
    %v190 = vmul.f32 %v185, %v189
    %v191 = vadd.f32 %v190, 0.05243302
    %v192 = vmul.f32 %v185, %v191
    %v193 = vadd.f32 %v192, 0.18741608
    %v194 = vmul.f32 %v185, %v193
    %v195 = vadd.f32 %v194, 1.1283791
    %v196 = vmul.f32 %v176, %v195
    %v197 = vmul.f32 %v185, 3.8918573e-05
    %v198 = vadd.f32 %v197, 0.001143296
    %v199 = vmul.f32 %v185, %v198
    %v200 = vadd.f32 %v199, 0.014752088
    %v201 = vmul.f32 %v185, %v200
    %v202 = vadd.f32 %v201, 0.112945676
    %v203 = vmul.f32 %v185, %v202
    %v204 = vadd.f32 %v203, 0.4994258
    %v205 = vmul.f32 %v185, %v204
    %v206 = vadd.f32 %v205, 1.0
    %v207 = vrcp.pop %v206
    %v208 = vmul.f32 %v206, %v207
    %v209 = vsub.f32 1.0, %v208
    %v210 = vmul.f32 %v207, %v209
    %v211 = vadd.f32 %v207, %v210
    %vm212 = vweird.f32 %v206
    %vm213 = vweird.f32 %v207
    %vm214 = vmor %vm212, %vm213
    %v215 = vsel %vm214, %v207, %v211
    %v216 = vand.u32 2147483647, %v206
    %vm217 = vcmp.eq.f32.partialorder %v216, 8.507059e+37
    %v218 = vand.u32 %v206, 2147483648
    %v219 = vor.u32 1.1754944e-38, %v218
    %v220 = vsel %vm217, %v219, %v215
    %v221 = vmul.f32 %v196, %v220
    %v222 = vmin.f32 %v221, 1.0
    %v223 = vmax.f32 %v222, -1.0
    %v224 = vmul.f32 %v177, %v177
    %v225 = vmin.f32 16.0, %v224
    %v226 = vmul.f32 %v225, 2.1237322e-06
    %v227 = vadd.f32 %v226, 0.00028619796
    %v228 = vmul.f32 %v225, %v227
    %v229 = vadd.f32 %v228, 0.0036580483
    %v230 = vmul.f32 %v225, %v229
    %v231 = vadd.f32 %v230, 0.05243302
    %v232 = vmul.f32 %v225, %v231
    %v233 = vadd.f32 %v232, 0.18741608
    %v234 = vmul.f32 %v225, %v233
    %v235 = vadd.f32 %v234, 1.1283791
    %v236 = vmul.f32 %v177, %v235
    %v237 = vmul.f32 %v225, 3.8918573e-05
    %v238 = vadd.f32 %v237, 0.001143296
    %v239 = vmul.f32 %v225, %v238
    %v240 = vadd.f32 %v239, 0.014752088
    %v241 = vmul.f32 %v225, %v240
    %v242 = vadd.f32 %v241, 0.112945676
    %v243 = vmul.f32 %v225, %v242
    %v244 = vadd.f32 %v243, 0.4994258
    %v245 = vmul.f32 %v225, %v244
    %v246 = vadd.f32 %v245, 1.0
    %v247 = vrcp.pop %v246
    %v248 = vmul.f32 %v246, %v247
    %v249 = vsub.f32 1.0, %v248
    %v250 = vmul.f32 %v247, %v249
    %v251 = vadd.f32 %v247, %v250
    %vm252 = vweird.f32 %v246
    %vm253 = vweird.f32 %v247
    %vm254 = vmor %vm252, %vm253
    %v255 = vsel %vm254, %v247, %v251
    %v256 = vand.u32 2147483647, %v246
    %vm257 = vcmp.eq.f32.partialorder %v256, 8.507059e+37
    %v258 = vand.u32 %v246, 2147483648
    %v259 = vor.u32 1.1754944e-38, %v258
    %v260 = vsel %vm257, %v259, %v255
    %v261 = vmul.f32 %v236, %v260
    %v262 = vmin.f32 %v261, 1.0
    %v263 = vmax.f32 %v262, -1.0
    %v264 = vmul.f32 %v178, %v178
    %v265 = vmin.f32 16.0, %v264
    %v266 = vmul.f32 %v265, 2.1237322e-06
    %v267 = vadd.f32 %v266, 0.00028619796
    %v268 = vmul.f32 %v265, %v267
    %v269 = vadd.f32 %v268, 0.0036580483
    %v270 = vmul.f32 %v265, %v269
    %v271 = vadd.f32 %v270, 0.05243302
    %v272 = vmul.f32 %v265, %v271
    %v273 = vadd.f32 %v272, 0.18741608
    %v274 = vmul.f32 %v265, %v273
    %v275 = vadd.f32 %v274, 1.1283791
    %v276 = vmul.f32 %v178, %v275
    %v277 = vmul.f32 %v265, 3.8918573e-05
    %v278 = vadd.f32 %v277, 0.001143296
    %v279 = vmul.f32 %v265, %v278
    %v280 = vadd.f32 %v279, 0.014752088
    %v281 = vmul.f32 %v265, %v280
    %v282 = vadd.f32 %v281, 0.112945676
    %v283 = vmul.f32 %v265, %v282
    %v284 = vadd.f32 %v283, 0.4994258
    %v285 = vmul.f32 %v265, %v284
    %v286 = vadd.f32 %v285, 1.0
    %v287 = vrcp.pop %v286
    %v288 = vmul.f32 %v286, %v287
    %v289 = vsub.f32 1.0, %v288
    %v290 = vmul.f32 %v287, %v289
    %v291 = vadd.f32 %v287, %v290
    %vm292 = vweird.f32 %v286
    %vm293 = vweird.f32 %v287
    %vm294 = vmor %vm292, %vm293
    %v295 = vsel %vm294, %v287, %v291
    %v296 = vand.u32 2147483647, %v286
    %vm297 = vcmp.eq.f32.partialorder %v296, 8.507059e+37
    %v298 = vand.u32 %v286, 2147483648
    %v299 = vor.u32 1.1754944e-38, %v298
    %v300 = vsel %vm297, %v299, %v295
    %v301 = vmul.f32 %v276, %v300
    %v302 = vmin.f32 %v301, 1.0
    %v303 = vmax.f32 %v302, -1.0
    %v304 = vmul.f32 %v179, %v179
    %v305 = vmin.f32 16.0, %v304
    %v306 = vmul.f32 %v305, 2.1237322e-06
    %v307 = vadd.f32 %v306, 0.00028619796
    %v308 = vmul.f32 %v305, %v307
    %v309 = vadd.f32 %v308, 0.0036580483
    %v310 = vmul.f32 %v305, %v309
    %v311 = vadd.f32 %v310, 0.05243302
    %v312 = vmul.f32 %v305, %v311
    %v313 = vadd.f32 %v312, 0.18741608
    %v314 = vmul.f32 %v305, %v313
    %v315 = vadd.f32 %v314, 1.1283791
    %v316 = vmul.f32 %v179, %v315
    %v317 = vmul.f32 %v305, 3.8918573e-05
    %v318 = vadd.f32 %v317, 0.001143296
    %v319 = vmul.f32 %v305, %v318
    %v320 = vadd.f32 %v319, 0.014752088
    %v321 = vmul.f32 %v305, %v320
    %v322 = vadd.f32 %v321, 0.112945676
    %v323 = vmul.f32 %v305, %v322
    %v324 = vadd.f32 %v323, 0.4994258
    %v325 = vmul.f32 %v305, %v324
    %v326 = vadd.f32 %v325, 1.0
    %v327 = vrcp.pop %v326
    %v328 = vmul.f32 %v326, %v327
    %v329 = vsub.f32 1.0, %v328
    %v330 = vmul.f32 %v327, %v329
    %v331 = vadd.f32 %v327, %v330
    %vm332 = vweird.f32 %v326
    %vm333 = vweird.f32 %v327
    %vm334 = vmor %vm332, %vm333
    %v335 = vsel %vm334, %v327, %v331
    %v336 = vand.u32 2147483647, %v326
    %vm337 = vcmp.eq.f32.partialorder %v336, 8.507059e+37
    %v338 = vand.u32 %v326, 2147483648
    %v339 = vor.u32 1.1754944e-38, %v338
    %v340 = vsel %vm337, %v339, %v335
    %v341 = vmul.f32 %v316, %v340
    %v342 = vmin.f32 %v341, 1.0
    %v343 = vmax.f32 %v342, -1.0
    %v344 = vmul.f32 %v180, %v180
    %v345 = vmin.f32 16.0, %v344
    %v346 = vmul.f32 %v345, 2.1237322e-06
    %v347 = vadd.f32 %v346, 0.00028619796
    %v348 = vmul.f32 %v345, %v347
    %v349 = vadd.f32 %v348, 0.0036580483
    %v350 = vmul.f32 %v345, %v349
    %v351 = vadd.f32 %v350, 0.05243302
    %v352 = vmul.f32 %v345, %v351
    %v353 = vadd.f32 %v352, 0.18741608
    %v354 = vmul.f32 %v345, %v353
    %v355 = vadd.f32 %v354, 1.1283791
    %v356 = vmul.f32 %v180, %v355
    %v357 = vmul.f32 %v345, 3.8918573e-05
    %v358 = vadd.f32 %v357, 0.001143296
    %v359 = vmul.f32 %v345, %v358
    %v360 = vadd.f32 %v359, 0.014752088
    %v361 = vmul.f32 %v345, %v360
    %v362 = vadd.f32 %v361, 0.112945676
    %v363 = vmul.f32 %v345, %v362
    %v364 = vadd.f32 %v363, 0.4994258
    %v365 = vmul.f32 %v345, %v364
    %v366 = vadd.f32 %v365, 1.0
    %v367 = vrcp.pop %v366
    %v368 = vmul.f32 %v366, %v367
    %v369 = vsub.f32 1.0, %v368
    %v370 = vmul.f32 %v367, %v369
    %v371 = vadd.f32 %v367, %v370
    %vm372 = vweird.f32 %v366
    %vm373 = vweird.f32 %v367
    %vm374 = vmor %vm372, %vm373
    %v375 = vsel %vm374, %v367, %v371
    %v376 = vand.u32 2147483647, %v366
    %vm377 = vcmp.eq.f32.partialorder %v376, 8.507059e+37
    %v378 = vand.u32 %v366, 2147483648
    %v379 = vor.u32 1.1754944e-38, %v378
    %v380 = vsel %vm377, %v379, %v375
    %v381 = vmul.f32 %v356, %v380
    %v382 = vmin.f32 %v381, 1.0
    %v383 = vmax.f32 %v382, -1.0
    %v384 = vmul.f32 %v181, %v181
    %v385 = vmin.f32 16.0, %v384
    %v386 = vmul.f32 %v385, 2.1237322e-06
    %v387 = vadd.f32 %v386, 0.00028619796
    %v388 = vmul.f32 %v385, %v387
    %v389 = vadd.f32 %v388, 0.0036580483
    %v390 = vmul.f32 %v385, %v389
    %v391 = vadd.f32 %v390, 0.05243302
    %v392 = vmul.f32 %v385, %v391
    %v393 = vadd.f32 %v392, 0.18741608
    %v394 = vmul.f32 %v385, %v393
    %v395 = vadd.f32 %v394, 1.1283791
    %v396 = vmul.f32 %v181, %v395
    %v397 = vmul.f32 %v385, 3.8918573e-05
    %v398 = vadd.f32 %v397, 0.001143296
    %v399 = vmul.f32 %v385, %v398
    %v400 = vadd.f32 %v399, 0.014752088
    %v401 = vmul.f32 %v385, %v400
    %v402 = vadd.f32 %v401, 0.112945676
    %v403 = vmul.f32 %v385, %v402
    %v404 = vadd.f32 %v403, 0.4994258
    %v405 = vmul.f32 %v385, %v404
    %v406 = vadd.f32 %v405, 1.0
    %v407 = vrcp.pop %v406
    %v408 = vmul.f32 %v406, %v407
    %v409 = vsub.f32 1.0, %v408
    %v410 = vmul.f32 %v407, %v409
    %v411 = vadd.f32 %v407, %v410
    %vm412 = vweird.f32 %v406
    %vm413 = vweird.f32 %v407
    %vm414 = vmor %vm412, %vm413
    %v415 = vsel %vm414, %v407, %v411
    %v416 = vand.u32 2147483647, %v406
    %vm417 = vcmp.eq.f32.partialorder %v416, 8.507059e+37
    %v418 = vand.u32 %v406, 2147483648
    %v419 = vor.u32 1.1754944e-38, %v418
    %v420 = vsel %vm417, %v419, %v415
    %v421 = vmul.f32 %v396, %v420
    %v422 = vmin.f32 %v421, 1.0
    %v423 = vmax.f32 %v422, -1.0
    %v424 = vmul.f32 %v182, %v182
    %v425 = vmin.f32 16.0, %v424
    %v426 = vmul.f32 %v425, 2.1237322e-06
    %v427 = vadd.f32 %v426, 0.00028619796
    %v428 = vmul.f32 %v425, %v427
    %v429 = vadd.f32 %v428, 0.0036580483
    %v430 = vmul.f32 %v425, %v429
    %v431 = vadd.f32 %v430, 0.05243302
    %v432 = vmul.f32 %v425, %v431
    %v433 = vadd.f32 %v432, 0.18741608
    %v434 = vmul.f32 %v425, %v433
    %v435 = vadd.f32 %v434, 1.1283791
    %v436 = vmul.f32 %v182, %v435
    %v437 = vmul.f32 %v425, 3.8918573e-05
    %v438 = vadd.f32 %v437, 0.001143296
    %v439 = vmul.f32 %v425, %v438
    %v440 = vadd.f32 %v439, 0.014752088
    %v441 = vmul.f32 %v425, %v440
    %v442 = vadd.f32 %v441, 0.112945676
    %v443 = vmul.f32 %v425, %v442
    %v444 = vadd.f32 %v443, 0.4994258
    %v445 = vmul.f32 %v425, %v444
    %v446 = vadd.f32 %v445, 1.0
    %v447 = vrcp.pop %v446
    %v448 = vmul.f32 %v446, %v447
    %v449 = vsub.f32 1.0, %v448
    %v450 = vmul.f32 %v447, %v449
    %v451 = vadd.f32 %v447, %v450
    %vm452 = vweird.f32 %v446
    %vm453 = vweird.f32 %v447
    %vm454 = vmor %vm452, %vm453
    %v455 = vsel %vm454, %v447, %v451
    %v456 = vand.u32 2147483647, %v446
    %vm457 = vcmp.eq.f32.partialorder %v456, 8.507059e+37
    %v458 = vand.u32 %v446, 2147483648
    %v459 = vor.u32 1.1754944e-38, %v458
    %v460 = vsel %vm457, %v459, %v455
    %v461 = vmul.f32 %v436, %v460
    %v462 = vmin.f32 %v461, 1.0
    %v463 = vmax.f32 %v462, -1.0
    %v464 = vmul.f32 %v183, %v183
    %v465 = vmin.f32 16.0, %v464
    %v466 = vmul.f32 %v465, 2.1237322e-06
    %v467 = vadd.f32 %v466, 0.00028619796
    %v468 = vmul.f32 %v465, %v467
    %v469 = vadd.f32 %v468, 0.0036580483
    %v470 = vmul.f32 %v465, %v469
    %v471 = vadd.f32 %v470, 0.05243302
    %v472 = vmul.f32 %v465, %v471
    %v473 = vadd.f32 %v472, 0.18741608
    %v474 = vmul.f32 %v465, %v473
    %v475 = vadd.f32 %v474, 1.1283791
    %v476 = vmul.f32 %v183, %v475
    %v477 = vmul.f32 %v465, 3.8918573e-05
    %v478 = vadd.f32 %v477, 0.001143296
    %v479 = vmul.f32 %v465, %v478
    %v480 = vadd.f32 %v479, 0.014752088
    %v481 = vmul.f32 %v465, %v480
    %v482 = vadd.f32 %v481, 0.112945676
    %v483 = vmul.f32 %v465, %v482
    %v484 = vadd.f32 %v483, 0.4994258
    %v485 = vmul.f32 %v465, %v484
    %v486 = vadd.f32 %v485, 1.0
    %v487 = vrcp.pop %v486
    %v488 = vmul.f32 %v486, %v487
    %v489 = vsub.f32 1.0, %v488
    %v490 = vmul.f32 %v487, %v489
    %v491 = vadd.f32 %v487, %v490
    %vm492 = vweird.f32 %v486
    %vm493 = vweird.f32 %v487
    %vm494 = vmor %vm492, %vm493
    %v495 = vsel %vm494, %v487, %v491
    %v496 = vand.u32 2147483647, %v486
    %vm497 = vcmp.eq.f32.partialorder %v496, 8.507059e+37
    %v498 = vand.u32 %v486, 2147483648
    %v499 = vor.u32 1.1754944e-38, %v498
    %v500 = vsel %vm497, %v499, %v495
    %v501 = vmul.f32 %v476, %v500
    %v502 = vmin.f32 %v501, 1.0
    %v503 = vmax.f32 %v502, -1.0
    %v504 = vadd.f32 %v223, 1.0
    %v505 = vadd.f32 %v263, 1.0
    %v506 = vadd.f32 %v303, 1.0
    %v507 = vadd.f32 %v343, 1.0
    %v508 = vadd.f32 %v383, 1.0
    %v509 = vadd.f32 %v423, 1.0
    %v510 = vadd.f32 %v463, 1.0
    %v511 = vadd.f32 %v503, 1.0
    %v512 = vmul.f32 %v168, %v504
    %v513 = vmul.f32 %v169, %v505
    %v514 = vmul.f32 %v170, %v506
    %v515 = vmul.f32 %v171, %v507
    %v516 = vmul.f32 %v172, %v508
    %v517 = vmul.f32 %v173, %v509
    %v518 = vmul.f32 %v174, %v510
    %v519 = vmul.f32 %v175, %v511
    %v520 = vld [vmem:[#allocation7] sm:$0xff]
    %v521 = vld [vmem:[#allocation7 + $0x8] sm:$0xff]
    %v522 = vld [vmem:[#allocation7 + $0x10] sm:$0xff]
    %v523 = vld [vmem:[#allocation7 + $0x18] sm:$0xff]
    %v524 = vld [vmem:[#allocation7 + $0x20] sm:$0xff]
    %v525 = vld [vmem:[#allocation7 + $0x28] sm:$0xff]
    %v526 = vld [vmem:[#allocation7 + $0x30] sm:$0xff]
    %v527 = vld [vmem:[#allocation7 + $0x38] sm:$0xff]
    %v528 = vld [vmem:[#allocation7 + $0x40] sm:$0xff]
    %v529 = vld [vmem:[#allocation7 + $0x48] sm:$0xff]
    %v530 = vld [vmem:[#allocation7 + $0x50] sm:$0xff]
    %v531 = vld [vmem:[#allocation7 + $0x58] sm:$0xff]
    %v532 = vld [vmem:[#allocation7 + $0x60] sm:$0xff]
    %v533 = vld [vmem:[#allocation7 + $0x68] sm:$0xff]
    %v534 = vld [vmem:[#allocation7 + $0x70] sm:$0xff]
    %v535 = vld [vmem:[#allocation7 + $0x78] sm:$0xff]
    %v536 = vld [vmem:[#allocation7 + $0x80] sm:$0xff]
    %v537 = vld [vmem:[#allocation7 + $0x88] sm:$0xff]
    %v538 = vld [vmem:[#allocation7 + $0x90] sm:$0xff]
    %v539 = vld [vmem:[#allocation7 + $0x98] sm:$0xff]
    %v540 = vld [vmem:[#allocation7 + $0xa0] sm:$0xff]
    %v541 = vld [vmem:[#allocation7 + $0xa8] sm:$0xff]
    %v542 = vld [vmem:[#allocation7 + $0xb0] sm:$0xff]
    %v543 = vld [vmem:[#allocation7 + $0xb8] sm:$0xff]
    %v544 = vld [vmem:[#allocation7 + $0xc0] sm:$0xff]
    %v545 = vld [vmem:[#allocation7 + $0xc8] sm:$0xff]
    %v546 = vld [vmem:[#allocation7 + $0xd0] sm:$0xff]
    %v547 = vld [vmem:[#allocation7 + $0xd8] sm:$0xff]
    %v548 = vld [vmem:[#allocation7 + $0xe0] sm:$0xff]
    %v549 = vld [vmem:[#allocation7 + $0xe8] sm:$0xff]
    %v550 = vld [vmem:[#allocation7 + $0xf0] sm:$0xff]
    %v551 = vld [vmem:[#allocation7 + $0xf8] sm:$0xff]
    %v552 = vld [vmem:[%s4] sm:$0x1]
    %v554 = vperm.slane %v552, 0
    %556 = vmatpush.msra.mxu0 %v535
    %557 = vmatpush.msra.mxu0 %v534
    %558 = vmatpush.msra.mxu0 %v533
    %559 = vmatpush.msra.mxu0 %v532
    %560 = vmatpush.msra.mxu0 %v531
    %561 = vmatpush.msra.mxu0 %v530
    %562 = vmatpush.msra.mxu0 %v529
    %563 = vmatpush.msra.mxu0 %v528
    %564 = vmatpush.msra.mxu0 %v527
    %565 = vmatpush.msra.mxu0 %v526
    %566 = vmatpush.msra.mxu0 %v525
    %567 = vmatpush.msra.mxu0 %v524
    %568 = vmatpush.msra.mxu0 %v523
    %569 = vmatpush.msra.mxu0 %v522
    %570 = vmatpush.msra.mxu0 %v521
    %571 = vmatpush.msra.mxu0 %v520
    %572 = vmatmul.f32.gmra.mxu0 %v512
    %v573 = vpop.f32.mrf.mxu0
    %v574 = vadd.f32 %v554, %v573
    %575 = vmatmul.f32.gmra.mxu0 %v514
    %v576 = vpop.f32.mrf.mxu0
    %v577 = vadd.f32 %v554, %v576
    %578 = vmatmul.f32.gmra.mxu0 %v516
    %v579 = vpop.f32.mrf.mxu0
    %v580 = vadd.f32 %v554, %v579
    %581 = vmatmul.f32.gmra.mxu0 %v518
    %v582 = vpop.f32.mrf.mxu0
    %v583 = vadd.f32 %v554, %v582
    %584 = vdwg.mxu0
    %585 = vmatpush.msra.mxu0 %v551
    %586 = vmatpush.msra.mxu0 %v550
    %587 = vmatpush.msra.mxu0 %v549
    %588 = vmatpush.msra.mxu0 %v548
    %589 = vmatpush.msra.mxu0 %v547
    %590 = vmatpush.msra.mxu0 %v546
    %591 = vmatpush.msra.mxu0 %v545
    %592 = vmatpush.msra.mxu0 %v544
    %593 = vmatpush.msra.mxu0 %v543
    %594 = vmatpush.msra.mxu0 %v542
    %595 = vmatpush.msra.mxu0 %v541
    %596 = vmatpush.msra.mxu0 %v540
    %597 = vmatpush.msra.mxu0 %v539
    %598 = vmatpush.msra.mxu0 %v538
    %599 = vmatpush.msra.mxu0 %v537
    %600 = vmatpush.msra.mxu0 %v536
    %601 = vmatmul.f32.gmra.mxu0 %v513
    %v602 = vpop.f32.mrf.mxu0
    %v603 = vadd.f32 %v574, %v602
    %604 = vmatmul.f32.gmra.mxu0 %v515
    %v605 = vpop.f32.mrf.mxu0
    %v606 = vadd.f32 %v577, %v605
    %607 = vmatmul.f32.gmra.mxu0 %v517
    %v608 = vpop.f32.mrf.mxu0
    %v609 = vadd.f32 %v580, %v608
    %610 = vmatmul.f32.gmra.mxu0 %v519
    %v611 = vpop.f32.mrf.mxu0
    %v612 = vadd.f32 %v583, %v611
    %613 = vdwg.mxu0
    %614 = vst [vmem:[#allocation8] sm:$0xff] %v603
    %615 = vst [vmem:[#allocation8 + $0x8] sm:$0xff] %v606
    %616 = vst [vmem:[#allocation8 + $0x10] sm:$0xff] %v609
    %617 = vst [vmem:[#allocation8 + $0x18] sm:$0xff] %v612
    // Predicated region
    $region34: #{mlp_pallas.1} parent=1 // pred_check
      _
    $region35: #{mlp_pallas.1} parent=1 // pred_check_branch
      %619 = sbr.rel (0) target = $region37
    $region36: #{mlp_pallas.1} parent=1 // pred_region
      %621 = vsyncadd [#allocation4], 0
      %s622 = sshll.u32 [#allocation8], 4
      %s623 = int_to_ptr.vmem [resolvable:$true] %s622
      %s624 = sshll.u32 %s5, 4
      %s625 = int_to_ptr.hbm [resolvable:$true] %s624
      %630 = dma.vmem_to_hbm [thread:$0]  %s623, 512, %s625, [#allocation4], 128, 128, 8
    $region37: #{mlp_pallas.1} parent=1 // pred_fallthru
      _
    // Predicated region
    $region38: #{mlp_pallas.1} parent=1 // pred_check
      _
    $region39: #{mlp_pallas.1} parent=1 // pred_check_branch
      %632 = sbr.rel (0) target = $region41
    $region40: #{mlp_pallas.1} parent=1 // pred_region
      %634 = dma.done [#allocation4], 512
    $region41: #{mlp_pallas.1} parent=1 // pred_fallthru
      _
    %635 = vsyncpa [#allocation3], 1
    %636 = vsyncpa [#allocation6], 1
    %637 = vsyncpa [#allocation4], 1

</llo_original>
